<compile_context>
chip_gen: v6e
topology: v6e:2x2x1
jax: 0.10.0
libtpu: 0.0.40
codegen_flags: <defaults>
</compile_context>

<pallas_src>
import jax
import jax.numpy as jnp
from jax import lax
from jax.experimental import pallas as pl
from jax.experimental.pallas import tpu as pltpu

# ---- tiny synthetic config (stand-in for ModelConfig's wrapped causal LM) ----
VOCAB = 128
HIDDEN = 32
N_HEADS = 2
HEAD_DIM = HIDDEN // N_HEADS
FFN = 64
LORA_R = 16
LORA_ALPHA = 32
LORA_SCALE = LORA_ALPHA / LORA_R          # standard LoRA scaling alpha/r = 2.0
RMS_EPS = 1e-6
DTYPE = jnp.bfloat16                      # weight storage (matches torch_dtype='bfloat16')


# ------------------------- fully fused decoder kernel --------------------------

def make_fused_kernel(seq):
    def kernel(ids_ref, embed_ref, ln1_ref, wqkv_ref, wo_ref, ln2_ref,
               wg_ref, wu_ref, wd_ref, lnf_ref, wlm_ref, o_ref):
        f32 = jnp.float32

        def rms(v, w_ref):
            var = jnp.mean(v * v, axis=-1, keepdims=True)
            return v * lax.rsqrt(var + RMS_EPS) * w_ref[...].astype(f32)

        # --- embedding lookup as a one-hot MXU matmul (gather-free, table in VMEM) ---
        ids = ids_ref[0]                                               # (S, 1) int32
        vocab_iota = lax.broadcasted_iota(jnp.int32, (seq, VOCAB), 1)
        one_hot = (ids == vocab_iota).astype(DTYPE)                    # (S, VOCAB)
        x = jnp.dot(one_hot, embed_ref[...],
                    preferred_element_type=f32)                        # (S, HIDDEN) residual, f32

        # --- RMSNorm + head-major fused QKV (one batched matmul over 3*N_HEADS) ---
        h1 = rms(x, ln1_ref).astype(DTYPE)                             # (S, HIDDEN)
        h1b = jnp.broadcast_to(h1[None], (3 * N_HEADS, seq, HIDDEN))   # cheap leading-dim bcast
        qkv = jnp.einsum('hsc,hcd->hsd', h1b, wqkv_ref[...],
                         preferred_element_type=f32)                   # (3H, S, D)
        q = qkv[0:N_HEADS].astype(DTYPE)                               # (H, S, D)
        k = qkv[N_HEADS:2 * N_HEADS].astype(DTYPE)
        v = qkv[2 * N_HEADS:3 * N_HEADS].astype(DTYPE)

        # --- causal attention, batched over heads (no per-head unroll / lane slicing) ---
        # TODO(synk): becomes an online-softmax (flash) kernel with a KV grid axis at real S.
        scale = HEAD_DIM ** -0.5
        s = jnp.einsum('hqd,hkd->hqk', q, k, preferred_element_type=f32) * scale
        row = lax.broadcasted_iota(jnp.int32, (N_HEADS, seq, seq), 1)
        col = lax.broadcasted_iota(jnp.int32, (N_HEADS, seq, seq), 2)
        s = jnp.where(col <= row, s, -1e30)                            # scores stay f32 -> -1e30 safe
        m = jnp.max(s, axis=-1, keepdims=True)
        p = jnp.exp(s - m)
        p = p * pl.reciprocal(jnp.sum(p, axis=-1, keepdims=True), approx=True)
        ao = jnp.einsum('hqk,hkd->hqd', p.astype(DTYPE), v,
                        preferred_element_type=f32)                    # (H, S, D)

        # --- o-proj (head-major weight, batched matmul + head-sum) + residual ---
        proj = jnp.einsum('hqd,hdo->hqo', ao.astype(DTYPE), wo_ref[...],
                          preferred_element_type=f32)                  # (H, S, HIDDEN)
        y = x + jnp.sum(proj, axis=0)                                  # (S, HIDDEN) f32

        # --- SwiGLU MLP (LoRA folded into gate/up/down) + residual ---
        h2 = rms(y, ln2_ref).astype(DTYPE)
        g = jnp.dot(h2, wg_ref[...], preferred_element_type=f32)
        u = jnp.dot(h2, wu_ref[...], preferred_element_type=f32)
        act = (g * (1.0 / (1.0 + jnp.exp(-g)))) * u                    # SiLU(g) * u, f32 (v5e-safe)
        z = y + jnp.dot(act.astype(DTYPE), wd_ref[...], preferred_element_type=f32)

        # --- final RMSNorm + tied LM head (128-lane output -> unmasked vst) ---
        hf = rms(z, lnf_ref).astype(DTYPE)
        o_ref[0] = jnp.dot(hf, wlm_ref[...],
                           preferred_element_type=f32).astype(o_ref.dtype)

    return kernel


def wronai_forward(w, input_ids):
    batch, seq = input_ids.shape
    ids = input_ids.reshape(batch, seq, 1).astype(jnp.int32)

    const2 = lambda b: (0, 0)
    const3 = lambda b: (0, 0, 0)

    logits = pl.pallas_call(
        make_fused_kernel(seq),
        grid=(batch,),
        in_specs=[
            pl.BlockSpec((1, seq, 1), lambda b: (b, 0, 0)),            # token ids
            pl.BlockSpec((VOCAB, HIDDEN), const2),                     # embedding table
            pl.BlockSpec((1, HIDDEN), const2),                         # ln1
            pl.BlockSpec((3 * N_HEADS, HIDDEN, HEAD_DIM), const3),     # fused head-major QKV
            pl.BlockSpec((N_HEADS, HEAD_DIM, HIDDEN), const3),         # head-major o-proj
            pl.BlockSpec((1, HIDDEN), const2),                         # ln2
            pl.BlockSpec((HIDDEN, FFN), const2),                       # gate
            pl.BlockSpec((HIDDEN, FFN), const2),                       # up
            pl.BlockSpec((FFN, HIDDEN), const2),                       # down
            pl.BlockSpec((1, HIDDEN), const2),                         # ln_f
            pl.BlockSpec((HIDDEN, VOCAB), const2),                     # tied LM head
        ],
        out_specs=pl.BlockSpec((1, seq, VOCAB), lambda b: (b, 0, 0)),
        out_shape=jax.ShapeDtypeStruct((batch, seq, VOCAB), jnp.float32),
        compiler_params=pltpu.CompilerParams(
            # shards the batch axis across v7x's 2 TensorCores; no-op on v5e/v6e (1 TC)
            dimension_semantics=("parallel",)),
    )(ids, w["embed"], w["ln1"], w["wqkv_hm"], w["wo_hm"], w["ln2"],
      w["wg"], w["wu"], w["wd"], w["lnf"], w["wlm"])
    return logits


# ------------------------------ parameter setup -------------------------------

def init_params(key):
    keys = jax.random.split(key, 32)
    it = iter(keys)

    def normal(shape, scale=0.02):
        return (scale * jax.random.normal(next(it), shape, dtype=jnp.float32)).astype(DTYPE)

    def lora_triplet(out_dim, in_dim):
        w = normal((out_dim, in_dim))
        a = normal((LORA_R, in_dim))
        b = normal((out_dim, LORA_R))   # nonzero so the LoRA contribution is exercised
        return (w, a, b)

    return {
        "embed": normal((VOCAB, HIDDEN)),
        "ln1_w": jnp.ones((1, HIDDEN), DTYPE),
        "ln2_w": jnp.ones((1, HIDDEN), DTYPE),
        "ln_f": jnp.ones((1, HIDDEN), DTYPE),
        "q": lora_triplet(HIDDEN, HIDDEN),
        "k": lora_triplet(HIDDEN, HIDDEN),
        "v": lora_triplet(HIDDEN, HIDDEN),
        "o": lora_triplet(HIDDEN, HIDDEN),
        "gate": lora_triplet(FFN, HIDDEN),
        "up": lora_triplet(FFN, HIDDEN),
        "down": lora_triplet(HIDDEN, FFN),
    }


def fold_params(params):
    """One-time weight prep (outside the per-call path): fold LoRA into the base
    weights, pre-transpose to (in, out), reshape q/k/v/o to HEAD-MAJOR 3D slabs so the
    kernel does no in-kernel lane slicing/relayout, and transpose the tied LM head."""
    def fold_t(triplet):
        w, a, b = (t.astype(jnp.float32) for t in triplet)
        w_eff = w + LORA_SCALE * (b @ a)            # (out, in)
        return w_eff.T                              # pre-transposed (in, out), f32

    def head_major_out(w_t):                        # (HIDDEN, HIDDEN) -> (H, HIDDEN, D)
        return jnp.transpose(w_t.reshape(HIDDEN, N_HEADS, HEAD_DIM), (1, 0, 2))

    wq, wk, wv = fold_t(params["q"]), fold_t(params["k"]), fold_t(params["v"])
    wqkv_hm = jnp.concatenate(
        [head_major_out(wq), head_major_out(wk), head_major_out(wv)],
        axis=0).astype(DTYPE)                                       # (3H, HIDDEN, D)
    wo_hm = fold_t(params["o"]).reshape(N_HEADS, HEAD_DIM, HIDDEN).astype(DTYPE)  # (H, D, HIDDEN)

    return {
        "embed": params["embed"],
        "ln1": params["ln1_w"],
        "ln2": params["ln2_w"],
        "lnf": params["ln_f"],
        "wqkv_hm": wqkv_hm,
        "wo_hm": wo_hm,
        "wg": fold_t(params["gate"]).astype(DTYPE),
        "wu": fold_t(params["up"]).astype(DTYPE),
        "wd": fold_t(params["down"]).astype(DTYPE),
        "wlm": params["embed"].T.astype(DTYPE),     # tied head, transposed once
    }


# ----------------------------------- main --------------------------------------

if __name__ == "__main__":
    key = jax.random.PRNGKey(0)
    pkey, dkey = jax.random.split(key)
    kernel_params = fold_params(init_params(pkey))

    B, S = 2, 8
    input_ids = jax.random.randint(dkey, (B, S), 0, VOCAB, dtype=jnp.int32)

    logits = jax.jit(wronai_forward)(kernel_params, input_ids)
    jax.block_until_ready(logits)

    assert logits.shape == (B, S, VOCAB)
    assert bool(jnp.all(jnp.isfinite(logits)))
    print("KERNEL_OK")
</pallas_src>

<mosaic_0001>
module attributes {stable_mosaic.version = 11 : i64} {
  func.func @kernel(%arg0: i32, %arg1: memref<1x8x1xi32, #tpu.memory_space<vmem>>, %arg2: memref<128x32xbf16, #tpu.memory_space<vmem>>, %arg3: memref<1x32xbf16, #tpu.memory_space<vmem>>, %arg4: memref<6x32x16xbf16, #tpu.memory_space<vmem>>, %arg5: memref<2x16x32xbf16, #tpu.memory_space<vmem>>, %arg6: memref<1x32xbf16, #tpu.memory_space<vmem>>, %arg7: memref<32x64xbf16, #tpu.memory_space<vmem>>, %arg8: memref<32x64xbf16, #tpu.memory_space<vmem>>, %arg9: memref<64x32xbf16, #tpu.memory_space<vmem>>, %arg10: memref<1x32xbf16, #tpu.memory_space<vmem>>, %arg11: memref<32x128xbf16, #tpu.memory_space<vmem>>, %arg12: memref<1x8x128xf32, #tpu.memory_space<vmem>>) attributes {dimension_semantics = [#tpu.dimension_semantics<parallel>], iteration_bounds = array<i64: 2>, scalar_prefetch = 0 : i64, scratch_operands = 0 : i64, tpu.core_type = #tpu.core_type<tc>, window_params = [{transform_indices = @transform_0, window_bounds = array<i64: 1, 8, 1>}, {pipeline_mode = #tpu.pipeline_mode<synchronous>, transform_indices = @transform_1, window_bounds = array<i64: 128, 32>}, {pipeline_mode = #tpu.pipeline_mode<synchronous>, transform_indices = @transform_2, window_bounds = array<i64: 1, 32>}, {pipeline_mode = #tpu.pipeline_mode<synchronous>, transform_indices = @transform_3, window_bounds = array<i64: 6, 32, 16>}, {pipeline_mode = #tpu.pipeline_mode<synchronous>, transform_indices = @transform_4, window_bounds = array<i64: 2, 16, 32>}, {pipeline_mode = #tpu.pipeline_mode<synchronous>, transform_indices = @transform_5, window_bounds = array<i64: 1, 32>}, {pipeline_mode = #tpu.pipeline_mode<synchronous>, transform_indices = @transform_6, window_bounds = array<i64: 32, 64>}, {pipeline_mode = #tpu.pipeline_mode<synchronous>, transform_indices = @transform_7, window_bounds = array<i64: 32, 64>}, {pipeline_mode = #tpu.pipeline_mode<synchronous>, transform_indices = @transform_8, window_bounds = array<i64: 64, 32>}, {pipeline_mode = #tpu.pipeline_mode<synchronous>, transform_indices = @transform_9, window_bounds = array<i64: 1, 32>}, {pipeline_mode = #tpu.pipeline_mode<synchronous>, transform_indices = @transform_10, window_bounds = array<i64: 32, 128>}, {transform_indices = @transform_11, window_bounds = array<i64: 1, 8, 128>}]} {
    %c0 = arith.constant 0 : index
    %c0_0 = arith.constant 0 : index
    %c0_1 = arith.constant 0 : index
    %0 = vector.load %arg1[%c0, %c0_0, %c0_1] : memref<1x8x1xi32, #tpu.memory_space<vmem>>, vector<1x8x1xi32>
    %1 = vector.shape_cast %0 : vector<1x8x1xi32> to vector<8x1xi32>
    %2 = tpu.iota {dimensions = array<i32: 1>} : vector<8x128xi32>
    %3 = vector.broadcast %1 : vector<8x1xi32> to vector<8x128xi32>
    %4 = arith.cmpi eq, %3, %2 : vector<8x128xi32>
    %5 = arith.extui %4 : vector<8x128xi1> to vector<8x128xi32>
    %6 = arith.sitofp %5 : vector<8x128xi32> to vector<8x128xf32>
    %7 = arith.truncf %6 : vector<8x128xf32> to vector<8x128xbf16>
    %c0_2 = arith.constant 0 : index
    %c0_3 = arith.constant 0 : index
    %8 = vector.load %arg2[%c0_2, %c0_3] : memref<128x32xbf16, #tpu.memory_space<vmem>>, vector<128x32xbf16>
    %cst = arith.constant dense<0.000000e+00> : vector<8x32xf32>
    %9 = tpu.matmul %7, %8, %cst {dimension_numbers = #tpu.dot_dimension_numbers<[1], [0], [0], [1], [0, 0, 1, 1], [], []>} : vector<8x128xbf16>, vector<128x32xbf16>, vector<8x32xf32> -> vector<8x32xf32>
    %10 = arith.mulf %9, %9 : vector<8x32xf32>
    %cst_4 = arith.constant dense<0.000000e+00> : vector<8xf32>
    %11 = vector.multi_reduction <add>, %10, %cst_4 [1] : vector<8x32xf32> to vector<8xf32>
    %12 = vector.shape_cast %11 : vector<8xf32> to vector<8x1xf32>
    %cst_5 = arith.constant 3.200000e+01 : f32
    %13 = vector.broadcast %cst_5 : f32 to vector<8x1xf32>
    %14 = arith.divf %12, %13 : vector<8x1xf32>
    %cst_6 = arith.constant 9.99999997E-7 : f32
    %15 = vector.broadcast %cst_6 : f32 to vector<8x1xf32>
    %16 = arith.addf %14, %15 : vector<8x1xf32>
    %17 = math.rsqrt %16 : vector<8x1xf32>
    %18 = vector.broadcast %17 : vector<8x1xf32> to vector<8x32xf32>
    %19 = arith.mulf %9, %18 : vector<8x32xf32>
    %c0_7 = arith.constant 0 : index
    %c0_8 = arith.constant 0 : index
    %20 = vector.load %arg3[%c0_7, %c0_8] : memref<1x32xbf16, #tpu.memory_space<vmem>>, vector<1x32xbf16>
    %21 = arith.extf %20 : vector<1x32xbf16> to vector<1x32xf32>
    %22 = vector.broadcast %21 : vector<1x32xf32> to vector<8x32xf32>
    %23 = arith.mulf %19, %22 : vector<8x32xf32>
    %24 = arith.truncf %23 : vector<8x32xf32> to vector<8x32xbf16>
    %25 = vector.shape_cast %24 : vector<8x32xbf16> to vector<1x8x32xbf16>
    %26 = vector.shape_cast %25 : vector<1x8x32xbf16> to vector<1x8x32xbf16>
    %27 = vector.broadcast %26 : vector<1x8x32xbf16> to vector<6x8x32xbf16>
    %c0_9 = arith.constant 0 : index
    %c0_10 = arith.constant 0 : index
    %c0_11 = arith.constant 0 : index
    %28 = vector.load %arg4[%c0_9, %c0_10, %c0_11] : memref<6x32x16xbf16, #tpu.memory_space<vmem>>, vector<6x32x16xbf16>
    "tpu.trace_start"() <{level = 10 : i32, message = "hsc,hcd->hsd"}> : () -> ()
    %cst_12 = arith.constant dense<0.000000e+00> : vector<6x8x16xf32>
    %29 = tpu.matmul %27, %28, %cst_12 {dimension_numbers = #tpu.dot_dimension_numbers<[2], [1], [1], [2], [0, 0, 0, 1, 1, 2], [0], [0]>} : vector<6x8x32xbf16>, vector<6x32x16xbf16>, vector<6x8x16xf32> -> vector<6x8x16xf32>
    "tpu.trace_stop"() : () -> ()
    %30 = vector.extract_strided_slice %29 {offsets = [0, 0, 0], sizes = [2, 8, 16], strides = [1, 1, 1]} : vector<6x8x16xf32> to vector<2x8x16xf32>
    %31 = arith.truncf %30 : vector<2x8x16xf32> to vector<2x8x16xbf16>
    %32 = vector.extract_strided_slice %29 {offsets = [2, 0, 0], sizes = [2, 8, 16], strides = [1, 1, 1]} : vector<6x8x16xf32> to vector<2x8x16xf32>
    %33 = arith.truncf %32 : vector<2x8x16xf32> to vector<2x8x16xbf16>
    %34 = vector.extract_strided_slice %29 {offsets = [4, 0, 0], sizes = [2, 8, 16], strides = [1, 1, 1]} : vector<6x8x16xf32> to vector<2x8x16xf32>
    %35 = arith.truncf %34 : vector<2x8x16xf32> to vector<2x8x16xbf16>
    "tpu.trace_start"() <{level = 10 : i32, message = "hqd,hkd->hqk"}> : () -> ()
    %cst_13 = arith.constant dense<0.000000e+00> : vector<2x8x8xf32>
    %36 = tpu.matmul %31, %33, %cst_13 {dimension_numbers = #tpu.dot_dimension_numbers<[2], [2], [1], [1], [0, 0, 0, 1, 1, 1], [0], [0]>} : vector<2x8x16xbf16>, vector<2x8x16xbf16>, vector<2x8x8xf32> -> vector<2x8x8xf32>
    "tpu.trace_stop"() : () -> ()
    %cst_14 = arith.constant 2.500000e-01 : f32
    %37 = vector.broadcast %cst_14 : f32 to vector<2x8x8xf32>
    %38 = arith.mulf %36, %37 : vector<2x8x8xf32>
    %39 = tpu.iota {dimensions = array<i32: 1>} : vector<2x8x8xi32>
    %40 = tpu.iota {dimensions = array<i32: 2>} : vector<2x8x8xi32>
    %41 = arith.cmpi sle, %40, %39 : vector<2x8x8xi32>
    %cst_15 = arith.constant -1.000000e+30 : f32
    %42 = vector.broadcast %cst_15 : f32 to vector<2x8x8xf32>
    %43 = arith.select %41, %38, %42 : vector<2x8x8xi1>, vector<2x8x8xf32>
    %cst_16 = arith.constant dense<0xFF800000> : vector<2x8xf32>
    %44 = vector.multi_reduction <maximumf>, %43, %cst_16 [2] : vector<2x8x8xf32> to vector<2x8xf32>
    %45 = vector.shape_cast %44 : vector<2x8xf32> to vector<2x8x1xf32>
    %46 = vector.broadcast %45 : vector<2x8x1xf32> to vector<2x8x8xf32>
    %47 = arith.subf %43, %46 : vector<2x8x8xf32>
    %48 = math.exp %47 : vector<2x8x8xf32>
    %cst_17 = arith.constant dense<0.000000e+00> : vector<2x8xf32>
    %49 = vector.multi_reduction <add>, %48, %cst_17 [2] : vector<2x8x8xf32> to vector<2x8xf32>
    %50 = vector.shape_cast %49 : vector<2x8xf32> to vector<2x8x1xf32>
    %51 = tpu.reciprocal %50 {approx = true} : vector<2x8x1xf32> -> vector<2x8x1xf32>
    %52 = vector.broadcast %51 : vector<2x8x1xf32> to vector<2x8x8xf32>
    %53 = arith.mulf %48, %52 : vector<2x8x8xf32>
    %54 = arith.truncf %53 : vector<2x8x8xf32> to vector<2x8x8xbf16>
    "tpu.trace_start"() <{level = 10 : i32, message = "hqk,hkd->hqd"}> : () -> ()
    %cst_18 = arith.constant dense<0.000000e+00> : vector<2x8x16xf32>
    %55 = tpu.matmul %54, %35, %cst_18 {dimension_numbers = #tpu.dot_dimension_numbers<[2], [1], [1], [2], [0, 0, 0, 1, 1, 2], [0], [0]>} : vector<2x8x8xbf16>, vector<2x8x16xbf16>, vector<2x8x16xf32> -> vector<2x8x16xf32>
    "tpu.trace_stop"() : () -> ()
    %56 = arith.truncf %55 : vector<2x8x16xf32> to vector<2x8x16xbf16>
    %c0_19 = arith.constant 0 : index
    %c0_20 = arith.constant 0 : index
    %c0_21 = arith.constant 0 : index
    %57 = vector.load %arg5[%c0_19, %c0_20, %c0_21] : memref<2x16x32xbf16, #tpu.memory_space<vmem>>, vector<2x16x32xbf16>
    "tpu.trace_start"() <{level = 10 : i32, message = "hqd,hdo->hqo"}> : () -> ()
    %cst_22 = arith.constant dense<0.000000e+00> : vector<2x8x32xf32>
    %58 = tpu.matmul %56, %57, %cst_22 {dimension_numbers = #tpu.dot_dimension_numbers<[2], [1], [1], [2], [0, 0, 0, 1, 1, 2], [0], [0]>} : vector<2x8x16xbf16>, vector<2x16x32xbf16>, vector<2x8x32xf32> -> vector<2x8x32xf32>
    "tpu.trace_stop"() : () -> ()
    %cst_23 = arith.constant dense<0.000000e+00> : vector<8x32xf32>
    %59 = vector.multi_reduction <add>, %58, %cst_23 [0] : vector<2x8x32xf32> to vector<8x32xf32>
    %60 = arith.addf %9, %59 : vector<8x32xf32>
    %61 = arith.mulf %60, %60 : vector<8x32xf32>
    %cst_24 = arith.constant dense<0.000000e+00> : vector<8xf32>
    %62 = vector.multi_reduction <add>, %61, %cst_24 [1] : vector<8x32xf32> to vector<8xf32>
    %63 = vector.shape_cast %62 : vector<8xf32> to vector<8x1xf32>
    %cst_25 = arith.constant 3.200000e+01 : f32
    %64 = vector.broadcast %cst_25 : f32 to vector<8x1xf32>
    %65 = arith.divf %63, %64 : vector<8x1xf32>
    %cst_26 = arith.constant 9.99999997E-7 : f32
    %66 = vector.broadcast %cst_26 : f32 to vector<8x1xf32>
    %67 = arith.addf %65, %66 : vector<8x1xf32>
    %68 = math.rsqrt %67 : vector<8x1xf32>
    %69 = vector.broadcast %68 : vector<8x1xf32> to vector<8x32xf32>
    %70 = arith.mulf %60, %69 : vector<8x32xf32>
    %c0_27 = arith.constant 0 : index
    %c0_28 = arith.constant 0 : index
    %71 = vector.load %arg6[%c0_27, %c0_28] : memref<1x32xbf16, #tpu.memory_space<vmem>>, vector<1x32xbf16>
    %72 = arith.extf %71 : vector<1x32xbf16> to vector<1x32xf32>
    %73 = vector.broadcast %72 : vector<1x32xf32> to vector<8x32xf32>
    %74 = arith.mulf %70, %73 : vector<8x32xf32>
    %75 = arith.truncf %74 : vector<8x32xf32> to vector<8x32xbf16>
    %c0_29 = arith.constant 0 : index
    %c0_30 = arith.constant 0 : index
    %76 = vector.load %arg7[%c0_29, %c0_30] : memref<32x64xbf16, #tpu.memory_space<vmem>>, vector<32x64xbf16>
    %cst_31 = arith.constant dense<0.000000e+00> : vector<8x64xf32>
    %77 = tpu.matmul %75, %76, %cst_31 {dimension_numbers = #tpu.dot_dimension_numbers<[1], [0], [0], [1], [0, 0, 1, 1], [], []>} : vector<8x32xbf16>, vector<32x64xbf16>, vector<8x64xf32> -> vector<8x64xf32>
    %c0_32 = arith.constant 0 : index
    %c0_33 = arith.constant 0 : index
    %78 = vector.load %arg8[%c0_32, %c0_33] : memref<32x64xbf16, #tpu.memory_space<vmem>>, vector<32x64xbf16>
    %cst_34 = arith.constant dense<0.000000e+00> : vector<8x64xf32>
    %79 = tpu.matmul %75, %78, %cst_34 {dimension_numbers = #tpu.dot_dimension_numbers<[1], [0], [0], [1], [0, 0, 1, 1], [], []>} : vector<8x32xbf16>, vector<32x64xbf16>, vector<8x64xf32> -> vector<8x64xf32>
    %cst_35 = arith.constant 0.000000e+00 : f32
    %80 = vector.broadcast %cst_35 : f32 to vector<8x64xf32>
    %81 = arith.subf %80, %77 : vector<8x64xf32>
    %82 = math.exp %81 : vector<8x64xf32>
    %cst_36 = arith.constant 1.000000e+00 : f32
    %83 = vector.broadcast %cst_36 : f32 to vector<8x64xf32>
    %84 = arith.addf %83, %82 : vector<8x64xf32>
    %cst_37 = arith.constant 1.000000e+00 : f32
    %85 = vector.broadcast %cst_37 : f32 to vector<8x64xf32>
    %86 = arith.divf %85, %84 : vector<8x64xf32>
    %87 = arith.mulf %77, %86 : vector<8x64xf32>
    %88 = arith.mulf %87, %79 : vector<8x64xf32>
    %89 = arith.truncf %88 : vector<8x64xf32> to vector<8x64xbf16>
    %c0_38 = arith.constant 0 : index
    %c0_39 = arith.constant 0 : index
    %90 = vector.load %arg9[%c0_38, %c0_39] : memref<64x32xbf16, #tpu.memory_space<vmem>>, vector<64x32xbf16>
    %cst_40 = arith.constant dense<0.000000e+00> : vector<8x32xf32>
    %91 = tpu.matmul %89, %90, %cst_40 {dimension_numbers = #tpu.dot_dimension_numbers<[1], [0], [0], [1], [0, 0, 1, 1], [], []>} : vector<8x64xbf16>, vector<64x32xbf16>, vector<8x32xf32> -> vector<8x32xf32>
    %92 = arith.addf %60, %91 : vector<8x32xf32>
    %93 = arith.mulf %92, %92 : vector<8x32xf32>
    %cst_41 = arith.constant dense<0.000000e+00> : vector<8xf32>
    %94 = vector.multi_reduction <add>, %93, %cst_41 [1] : vector<8x32xf32> to vector<8xf32>
    %95 = vector.shape_cast %94 : vector<8xf32> to vector<8x1xf32>
    %cst_42 = arith.constant 3.200000e+01 : f32
    %96 = vector.broadcast %cst_42 : f32 to vector<8x1xf32>
    %97 = arith.divf %95, %96 : vector<8x1xf32>
    %cst_43 = arith.constant 9.99999997E-7 : f32
    %98 = vector.broadcast %cst_43 : f32 to vector<8x1xf32>
    %99 = arith.addf %97, %98 : vector<8x1xf32>
    %100 = math.rsqrt %99 : vector<8x1xf32>
    %101 = vector.broadcast %100 : vector<8x1xf32> to vector<8x32xf32>
    %102 = arith.mulf %92, %101 : vector<8x32xf32>
    %c0_44 = arith.constant 0 : index
    %c0_45 = arith.constant 0 : index
    %103 = vector.load %arg10[%c0_44, %c0_45] : memref<1x32xbf16, #tpu.memory_space<vmem>>, vector<1x32xbf16>
    %104 = arith.extf %103 : vector<1x32xbf16> to vector<1x32xf32>
    %105 = vector.broadcast %104 : vector<1x32xf32> to vector<8x32xf32>
    %106 = arith.mulf %102, %105 : vector<8x32xf32>
    %107 = arith.truncf %106 : vector<8x32xf32> to vector<8x32xbf16>
    %c0_46 = arith.constant 0 : index
    %c0_47 = arith.constant 0 : index
    %108 = vector.load %arg11[%c0_46, %c0_47] : memref<32x128xbf16, #tpu.memory_space<vmem>>, vector<32x128xbf16>
    %cst_48 = arith.constant dense<0.000000e+00> : vector<8x128xf32>
    %109 = tpu.matmul %107, %108, %cst_48 {dimension_numbers = #tpu.dot_dimension_numbers<[1], [0], [0], [1], [0, 0, 1, 1], [], []>} : vector<8x32xbf16>, vector<32x128xbf16>, vector<8x128xf32> -> vector<8x128xf32>
    %c0_49 = arith.constant 0 : index
    %c0_50 = arith.constant 0 : index
    %c0_51 = arith.constant 0 : index
    %110 = vector.load %arg12[%c0_49, %c0_50, %c0_51] : memref<1x8x128xf32, #tpu.memory_space<vmem>>, vector<1x8x128xf32>
    %111 = vector.shape_cast %110 : vector<1x8x128xf32> to vector<8x128xf32>
    %112 = vector.shape_cast %109 : vector<8x128xf32> to vector<1x8x128xf32>
    tpu.vector_store %arg12[%c0_49, %c0_50, %c0_51], %112 {strides = array<i32>} : memref<1x8x128xf32, #tpu.memory_space<vmem>>, vector<1x8x128xf32>,
    return
  }
  func.func @transform_0(%arg0: i32) -> (i32, i32, i32) {
    %c0_i32 = arith.constant 0 : i32
    %c0_i32_0 = arith.constant 0 : i32
    %c0_i32_1 = arith.constant 0 : i32
    return %arg0, %c0_i32, %c0_i32_0 : i32, i32, i32
  }
  func.func @transform_1(%arg0: i32) -> (i32, i32) {
    %c0_i32 = arith.constant 0 : i32
    %c0_i32_0 = arith.constant 0 : i32
    %c0_i32_1 = arith.constant 0 : i32
    return %c0_i32, %c0_i32_0 : i32, i32
  }
  func.func @transform_2(%arg0: i32) -> (i32, i32) {
    %c0_i32 = arith.constant 0 : i32
    %c0_i32_0 = arith.constant 0 : i32
    %c0_i32_1 = arith.constant 0 : i32
    return %c0_i32, %c0_i32_0 : i32, i32
  }
  func.func @transform_3(%arg0: i32) -> (i32, i32, i32) {
    %c0_i32 = arith.constant 0 : i32
    %c0_i32_0 = arith.constant 0 : i32
    %c0_i32_1 = arith.constant 0 : i32
    %c0_i32_2 = arith.constant 0 : i32
    return %c0_i32, %c0_i32_0, %c0_i32_1 : i32, i32, i32
  }
  func.func @transform_4(%arg0: i32) -> (i32, i32, i32) {
    %c0_i32 = arith.constant 0 : i32
    %c0_i32_0 = arith.constant 0 : i32
    %c0_i32_1 = arith.constant 0 : i32
    %c0_i32_2 = arith.constant 0 : i32
    return %c0_i32, %c0_i32_0, %c0_i32_1 : i32, i32, i32
  }
  func.func @transform_5(%arg0: i32) -> (i32, i32) {
    %c0_i32 = arith.constant 0 : i32
    %c0_i32_0 = arith.constant 0 : i32
    %c0_i32_1 = arith.constant 0 : i32
    return %c0_i32, %c0_i32_0 : i32, i32
  }
  func.func @transform_6(%arg0: i32) -> (i32, i32) {
    %c0_i32 = arith.constant 0 : i32
    %c0_i32_0 = arith.constant 0 : i32
    %c0_i32_1 = arith.constant 0 : i32
    return %c0_i32, %c0_i32_0 : i32, i32
  }
  func.func @transform_7(%arg0: i32) -> (i32, i32) {
    %c0_i32 = arith.constant 0 : i32
    %c0_i32_0 = arith.constant 0 : i32
    %c0_i32_1 = arith.constant 0 : i32
    return %c0_i32, %c0_i32_0 : i32, i32
  }
  func.func @transform_8(%arg0: i32) -> (i32, i32) {
    %c0_i32 = arith.constant 0 : i32
    %c0_i32_0 = arith.constant 0 : i32
    %c0_i32_1 = arith.constant 0 : i32
    return %c0_i32, %c0_i32_0 : i32, i32
  }
  func.func @transform_9(%arg0: i32) -> (i32, i32) {
    %c0_i32 = arith.constant 0 : i32
    %c0_i32_0 = arith.constant 0 : i32
    %c0_i32_1 = arith.constant 0 : i32
    return %c0_i32, %c0_i32_0 : i32, i32
  }
  func.func @transform_10(%arg0: i32) -> (i32, i32) {
    %c0_i32 = arith.constant 0 : i32
    %c0_i32_0 = arith.constant 0 : i32
    %c0_i32_1 = arith.constant 0 : i32
    return %c0_i32, %c0_i32_0 : i32, i32
  }
  func.func @transform_11(%arg0: i32) -> (i32, i32, i32) {
    %c0_i32 = arith.constant 0 : i32
    %c0_i32_0 = arith.constant 0 : i32
    %c0_i32_1 = arith.constant 0 : i32
    return %arg0, %c0_i32, %c0_i32_0 : i32, i32, i32
  }
}

</mosaic_0001>

<llo_original>
// kernel: wronai_forward.1
$region0: #{wronai_forward.1}
  #allocation0 [shape = 'u32[]', space=smem, size = 0x4, offset = 0x4, fixed_abs, tag = 'smem constant byte address 0x4 - core index']
  #allocation1 [shape = 'u32[144,128]{1,0:T(1,128)}', space=vmem, size = 0x12000, scoped, tag = 'internal scratch']
  %s0 = inlined_call_operand.vmem [shape: s32[2,8,1], index: 0, kind: input, shape index: {}]
  %s1 = inlined_call_operand.vmem [shape: bf16[128,32], index: 1, kind: input, shape index: {}]
  %s2 = inlined_call_operand.vmem [shape: bf16[1,32], index: 2, kind: input, shape index: {}]
  %s3 = inlined_call_operand.vmem [shape: bf16[6,32,16], index: 3, kind: input, shape index: {}]
  %s4 = inlined_call_operand.vmem [shape: bf16[2,16,32], index: 4, kind: input, shape index: {}]
  %s5 = inlined_call_operand.vmem [shape: bf16[1,32], index: 5, kind: input, shape index: {}]
  %s6 = inlined_call_operand.vmem [shape: bf16[32,64], index: 6, kind: input, shape index: {}]
  %s7 = inlined_call_operand.vmem [shape: bf16[32,64], index: 7, kind: input, shape index: {}]
  %s8 = inlined_call_operand.vmem [shape: bf16[64,32], index: 8, kind: input, shape index: {}]
  %s9 = inlined_call_operand.vmem [shape: bf16[1,32], index: 9, kind: input, shape index: {}]
  %s10 = inlined_call_operand.vmem [shape: bf16[32,128], index: 10, kind: input, shape index: {}]
  %s11 = inlined_call_operand.hbm [shape: f32[2,8,128], index: 11, kind: output, shape index: {}]
  %s12 = sld [smem:[#allocation0]]
  $region77: #{wronai_forward.1} parent=0
    _
  %s14 = ssub.s32 1, %s12
  %s15 = scalar_select 0, %s14, %s12
  $region1: #{wronai_forward.1} parent=0
    #allocation2 [shape = 'u8[8192]{0}', space=vmem, size = 0x2000, scoped, tag = 'output window, operand 0']
    #allocation3 [shape = 's32[2]{0}', space=sflag, size = 0x8, scoped, tag = 'scoped memory for wronai_forward.1']
    %16 = vsyncpa [#allocation3], 0
    %s17 = scalar_lea.sflag [#allocation3], 1
    %18 = vsyncpa %s17, 0
    loop: start=0, step=1, limit=4
    $region2: #{wronai_forward.1} parent=1 // loop_pre_header
      _
    $region3: #{wronai_forward.1} parent=1 // loop_header
      %s20 = sphi 0, %s24
      %p21 = scmp.ge.s32.totalorder %s20, 4
      %s30 = sphi 0, %s32
      %s33 = sphi 0, %s30
      %s34 = sphi 0, %s33
      %s50 = sphi 0, %s34
      %s54 = sphi 0, %s54
      %s56 = sphi 0, %s54
      %s57 = sphi 0, %s56
      %s71 = sphi 0, %s57
      %s75 = sphi 0, %s75
      %s77 = sphi 0, %s75
      %s78 = sphi 0, %s77
      %s92 = sphi 0, %s78
      %s96 = sphi 0, %s96
      %s98 = sphi 0, %s96
      %s99 = sphi 0, %s98
      %s113 = sphi 0, %s99
      %s117 = sphi 0, %s117
      %s119 = sphi 0, %s117
      %s120 = sphi 0, %s119
      %s134 = sphi 0, %s120
      %s138 = sphi 0, %s138
      %s140 = sphi 0, %s138
      %s141 = sphi 0, %s140
      %s155 = sphi 0, %s141
      %s159 = sphi 0, %s159
      %s161 = sphi 0, %s159
      %s162 = sphi 0, %s161
      %s176 = sphi 0, %s162
      %s180 = sphi 0, %s180
      %s182 = sphi 0, %s180
      %s183 = sphi 0, %s182
      %s197 = sphi 0, %s183
      %s201 = sphi 0, %s201
      %s203 = sphi 0, %s201
      %s204 = sphi 0, %s203
      %s218 = sphi 0, %s204
      %s222 = sphi 0, %s222
      %s224 = sphi 0, %s222
      %s225 = sphi 0, %s224
      %s239 = sphi 0, %s225
      %s243 = sphi 0, %s243
      %s245 = sphi 0, %s243
      %s246 = sphi 0, %s245
      %s260 = sphi 0, %s246
      %s266 = sphi 0, %s268
      %s269 = sphi 0, %s266
      %s270 = sphi 0, %s269
      %s286 = sphi 0, %s270
    $region4: #{wronai_forward.1} parent=1 // loop_header_branch
      %23 = sbr.rel (%p21) target = $region8
    $region5: #{wronai_forward.1} parent=1 // loop_body
      %s25 = ssub.s32 %s20, 1
      %s26 = ssub.s32 %s20, 2
      %s27 = sadd.s32 %s20, 1
      %s28 = ssub.s32 %s20, %s27
      %p29 = scmp.eq.s32.totalorder %s28, 0
      %s31 = sadd.s32 %s30, 1
      %s32 = scalar_select %p29, %s30, %s31
      %p35 = pneg %p29
      %p36 = scmp.eq.s32.totalorder %s20, 1
      %p37 = por %p35, %p36
      %p38 = scmp.ne.s32.totalorder %s30, %s33
      %p39 = scmp.eq.s32.totalorder %s20, 0
      %p40 = por %p38, %p39
      %p41 = scmp.ne.s32.totalorder %s30, %s33
      %p42 = scmp.eq.s32.totalorder %s25, 1
      %p43 = por %p41, %p42
      %p44 = scmp.ne.s32.totalorder %s33, %s34
      %p45 = scmp.eq.s32.totalorder %s25, 0
      %p46 = por %p44, %p45
      %p47 = scmp.ne.s32.totalorder %s33, %s34
      %p48 = scmp.eq.s32.totalorder %s26, 1
      %p49 = por %p47, %p48
      %p51 = scmp.ne.s32.totalorder %s34, %s50
      %p52 = scmp.eq.s32.totalorder %s26, 0
      %p53 = por %p51, %p52
      %s55 = sadd.s32 %s54, 1
      %p58 = scmp.eq.s32.totalorder %s20, 1
      %p59 = scmp.ne.s32.totalorder %s54, %s56
      %p60 = scmp.eq.s32.totalorder %s20, 0
      %p61 = por %p59, %p60
      %p62 = scmp.ne.s32.totalorder %s54, %s56
      %p63 = scmp.eq.s32.totalorder %s25, 1
      %p64 = por %p62, %p63
      %p65 = scmp.ne.s32.totalorder %s56, %s57
      %p66 = scmp.eq.s32.totalorder %s25, 0
      %p67 = por %p65, %p66
      %p68 = scmp.ne.s32.totalorder %s56, %s57
      %p69 = scmp.eq.s32.totalorder %s26, 1
      %p70 = por %p68, %p69
      %p72 = scmp.ne.s32.totalorder %s57, %s71
      %p73 = scmp.eq.s32.totalorder %s26, 0
      %p74 = por %p72, %p73
      %s76 = sadd.s32 %s75, 1
      %p79 = scmp.eq.s32.totalorder %s20, 1
      %p80 = scmp.ne.s32.totalorder %s75, %s77
      %p81 = scmp.eq.s32.totalorder %s20, 0
      %p82 = por %p80, %p81
      %p83 = scmp.ne.s32.totalorder %s75, %s77
      %p84 = scmp.eq.s32.totalorder %s25, 1
      %p85 = por %p83, %p84
      %p86 = scmp.ne.s32.totalorder %s77, %s78
      %p87 = scmp.eq.s32.totalorder %s25, 0
      %p88 = por %p86, %p87
      %p89 = scmp.ne.s32.totalorder %s77, %s78
      %p90 = scmp.eq.s32.totalorder %s26, 1
      %p91 = por %p89, %p90
      %p93 = scmp.ne.s32.totalorder %s78, %s92
      %p94 = scmp.eq.s32.totalorder %s26, 0
      %p95 = por %p93, %p94
      %s97 = sadd.s32 %s96, 1
      %p100 = scmp.eq.s32.totalorder %s20, 1
      %p101 = scmp.ne.s32.totalorder %s96, %s98
      %p102 = scmp.eq.s32.totalorder %s20, 0
      %p103 = por %p101, %p102
      %p104 = scmp.ne.s32.totalorder %s96, %s98
      %p105 = scmp.eq.s32.totalorder %s25, 1
      %p106 = por %p104, %p105
      %p107 = scmp.ne.s32.totalorder %s98, %s99
      %p108 = scmp.eq.s32.totalorder %s25, 0
      %p109 = por %p107, %p108
      %p110 = scmp.ne.s32.totalorder %s98, %s99
      %p111 = scmp.eq.s32.totalorder %s26, 1
      %p112 = por %p110, %p111
      %p114 = scmp.ne.s32.totalorder %s99, %s113
      %p115 = scmp.eq.s32.totalorder %s26, 0
      %p116 = por %p114, %p115
      %s118 = sadd.s32 %s117, 1
      %p121 = scmp.eq.s32.totalorder %s20, 1
      %p122 = scmp.ne.s32.totalorder %s117, %s119
      %p123 = scmp.eq.s32.totalorder %s20, 0
      %p124 = por %p122, %p123
      %p125 = scmp.ne.s32.totalorder %s117, %s119
      %p126 = scmp.eq.s32.totalorder %s25, 1
      %p127 = por %p125, %p126
      %p128 = scmp.ne.s32.totalorder %s119, %s120
      %p129 = scmp.eq.s32.totalorder %s25, 0
      %p130 = por %p128, %p129
      %p131 = scmp.ne.s32.totalorder %s119, %s120
      %p132 = scmp.eq.s32.totalorder %s26, 1
      %p133 = por %p131, %p132
      %p135 = scmp.ne.s32.totalorder %s120, %s134
      %p136 = scmp.eq.s32.totalorder %s26, 0
      %p137 = por %p135, %p136
      %s139 = sadd.s32 %s138, 1
      %p142 = scmp.eq.s32.totalorder %s20, 1
      %p143 = scmp.ne.s32.totalorder %s138, %s140
      %p144 = scmp.eq.s32.totalorder %s20, 0
      %p145 = por %p143, %p144
      %p146 = scmp.ne.s32.totalorder %s138, %s140
      %p147 = scmp.eq.s32.totalorder %s25, 1
      %p148 = por %p146, %p147
      %p149 = scmp.ne.s32.totalorder %s140, %s141
      %p150 = scmp.eq.s32.totalorder %s25, 0
      %p151 = por %p149, %p150
      %p152 = scmp.ne.s32.totalorder %s140, %s141
      %p153 = scmp.eq.s32.totalorder %s26, 1
      %p154 = por %p152, %p153
      %p156 = scmp.ne.s32.totalorder %s141, %s155
      %p157 = scmp.eq.s32.totalorder %s26, 0
      %p158 = por %p156, %p157
      %s160 = sadd.s32 %s159, 1
      %p163 = scmp.eq.s32.totalorder %s20, 1
      %p164 = scmp.ne.s32.totalorder %s159, %s161
      %p165 = scmp.eq.s32.totalorder %s20, 0
      %p166 = por %p164, %p165
      %p167 = scmp.ne.s32.totalorder %s159, %s161
      %p168 = scmp.eq.s32.totalorder %s25, 1
      %p169 = por %p167, %p168
      %p170 = scmp.ne.s32.totalorder %s161, %s162
      %p171 = scmp.eq.s32.totalorder %s25, 0
      %p172 = por %p170, %p171
      %p173 = scmp.ne.s32.totalorder %s161, %s162
      %p174 = scmp.eq.s32.totalorder %s26, 1
      %p175 = por %p173, %p174
      %p177 = scmp.ne.s32.totalorder %s162, %s176
      %p178 = scmp.eq.s32.totalorder %s26, 0
      %p179 = por %p177, %p178
      %s181 = sadd.s32 %s180, 1
      %p184 = scmp.eq.s32.totalorder %s20, 1
      %p185 = scmp.ne.s32.totalorder %s180, %s182
      %p186 = scmp.eq.s32.totalorder %s20, 0
      %p187 = por %p185, %p186
      %p188 = scmp.ne.s32.totalorder %s180, %s182
      %p189 = scmp.eq.s32.totalorder %s25, 1
      %p190 = por %p188, %p189
      %p191 = scmp.ne.s32.totalorder %s182, %s183
      %p192 = scmp.eq.s32.totalorder %s25, 0
      %p193 = por %p191, %p192
      %p194 = scmp.ne.s32.totalorder %s182, %s183
      %p195 = scmp.eq.s32.totalorder %s26, 1
      %p196 = por %p194, %p195
      %p198 = scmp.ne.s32.totalorder %s183, %s197
      %p199 = scmp.eq.s32.totalorder %s26, 0
      %p200 = por %p198, %p199
      %s202 = sadd.s32 %s201, 1
      %p205 = scmp.eq.s32.totalorder %s20, 1
      %p206 = scmp.ne.s32.totalorder %s201, %s203
      %p207 = scmp.eq.s32.totalorder %s20, 0
      %p208 = por %p206, %p207
      %p209 = scmp.ne.s32.totalorder %s201, %s203
      %p210 = scmp.eq.s32.totalorder %s25, 1
      %p211 = por %p209, %p210
      %p212 = scmp.ne.s32.totalorder %s203, %s204
      %p213 = scmp.eq.s32.totalorder %s25, 0
      %p214 = por %p212, %p213
      %p215 = scmp.ne.s32.totalorder %s203, %s204
      %p216 = scmp.eq.s32.totalorder %s26, 1
      %p217 = por %p215, %p216
      %p219 = scmp.ne.s32.totalorder %s204, %s218
      %p220 = scmp.eq.s32.totalorder %s26, 0
      %p221 = por %p219, %p220
      %s223 = sadd.s32 %s222, 1
      %p226 = scmp.eq.s32.totalorder %s20, 1
      %p227 = scmp.ne.s32.totalorder %s222, %s224
      %p228 = scmp.eq.s32.totalorder %s20, 0
      %p229 = por %p227, %p228
      %p230 = scmp.ne.s32.totalorder %s222, %s224
      %p231 = scmp.eq.s32.totalorder %s25, 1
      %p232 = por %p230, %p231
      %p233 = scmp.ne.s32.totalorder %s224, %s225
      %p234 = scmp.eq.s32.totalorder %s25, 0
      %p235 = por %p233, %p234
      %p236 = scmp.ne.s32.totalorder %s224, %s225
      %p237 = scmp.eq.s32.totalorder %s26, 1
      %p238 = por %p236, %p237
      %p240 = scmp.ne.s32.totalorder %s225, %s239
      %p241 = scmp.eq.s32.totalorder %s26, 0
      %p242 = por %p240, %p241
      %s244 = sadd.s32 %s243, 1
      %p247 = scmp.eq.s32.totalorder %s20, 1
      %p248 = scmp.ne.s32.totalorder %s243, %s245
      %p249 = scmp.eq.s32.totalorder %s20, 0
      %p250 = por %p248, %p249
      %p251 = scmp.ne.s32.totalorder %s243, %s245
      %p252 = scmp.eq.s32.totalorder %s25, 1
      %p253 = por %p251, %p252
      %p254 = scmp.ne.s32.totalorder %s245, %s246
      %p255 = scmp.eq.s32.totalorder %s25, 0
      %p256 = por %p254, %p255
      %p257 = scmp.ne.s32.totalorder %s245, %s246
      %p258 = scmp.eq.s32.totalorder %s26, 1
      %p259 = por %p257, %p258
      %p261 = scmp.ne.s32.totalorder %s246, %s260
      %p262 = scmp.eq.s32.totalorder %s26, 0
      %p263 = por %p261, %p262
      %s264 = ssub.s32 %s20, %s27
      %p265 = scmp.eq.s32.totalorder %s264, 0
      %s267 = sadd.s32 %s266, 1
      %s268 = scalar_select %p265, %s266, %s267
      %p271 = pneg %p265
      %p272 = scmp.eq.s32.totalorder %s20, 1
      %p273 = por %p271, %p272
      %p274 = scmp.ne.s32.totalorder %s266, %s269
      %p275 = scmp.eq.s32.totalorder %s20, 0
      %p276 = por %p274, %p275
      %p277 = scmp.ne.s32.totalorder %s266, %s269
      %p278 = scmp.eq.s32.totalorder %s25, 1
      %p279 = por %p277, %p278
      %p280 = scmp.ne.s32.totalorder %s269, %s270
      %p281 = scmp.eq.s32.totalorder %s25, 0
      %p282 = por %p280, %p281
      %p283 = scmp.ne.s32.totalorder %s269, %s270
      %p284 = scmp.eq.s32.totalorder %s26, 1
      %p285 = por %p283, %p284
      %p287 = scmp.ne.s32.totalorder %s270, %s286
      %p288 = scmp.eq.s32.totalorder %s26, 0
      %p289 = por %p287, %p288
      %p290 = scmp.le.s32.totalorder 1, %s20
      %p291 = scmp.lt.s32.totalorder %s20, 3
      %p292 = pnand %p290, %p291
      %p293 = pneg %p292
      // Predicated region
      $region9: #{wronai_forward.1} parent=5 // pred_check
        _
      $region10: #{wronai_forward.1} parent=5 // pred_check_branch
        %295 = sbr.rel (%p292) target = $region12
      $region11: #{wronai_forward.1} parent=5 // pred_region
        %s296 = ssub.s32 %s20, 1
        // Predicated region
        $region13: #{wronai_forward.1} parent=11 // pred_check
          %p297 = pneg %p67
        $region14: #{wronai_forward.1} parent=11 // pred_check_branch
          %299 = sbr.rel (%p297) target = $region16
        $region15: #{wronai_forward.1} parent=11 // pred_region
          _
        $region16: #{wronai_forward.1} parent=11 // pred_fallthru
          _
        // Predicated region
        $region17: #{wronai_forward.1} parent=11 // pred_check
          %p300 = pneg %p88
        $region18: #{wronai_forward.1} parent=11 // pred_check_branch
          %302 = sbr.rel (%p300) target = $region20
        $region19: #{wronai_forward.1} parent=11 // pred_region
          _
        $region20: #{wronai_forward.1} parent=11 // pred_fallthru
          _
        // Predicated region
        $region21: #{wronai_forward.1} parent=11 // pred_check
          %p303 = pneg %p109
        $region22: #{wronai_forward.1} parent=11 // pred_check_branch
          %305 = sbr.rel (%p303) target = $region24
        $region23: #{wronai_forward.1} parent=11 // pred_region
          _
        $region24: #{wronai_forward.1} parent=11 // pred_fallthru
          _
        // Predicated region
        $region25: #{wronai_forward.1} parent=11 // pred_check
          %p306 = pneg %p130
        $region26: #{wronai_forward.1} parent=11 // pred_check_branch
          %308 = sbr.rel (%p306) target = $region28
        $region27: #{wronai_forward.1} parent=11 // pred_region
          _
        $region28: #{wronai_forward.1} parent=11 // pred_fallthru
          _
        // Predicated region
        $region29: #{wronai_forward.1} parent=11 // pred_check
          %p309 = pneg %p151
        $region30: #{wronai_forward.1} parent=11 // pred_check_branch
          %311 = sbr.rel (%p309) target = $region32
        $region31: #{wronai_forward.1} parent=11 // pred_region
          _
        $region32: #{wronai_forward.1} parent=11 // pred_fallthru
          _
        // Predicated region
        $region33: #{wronai_forward.1} parent=11 // pred_check
          %p312 = pneg %p172
        $region34: #{wronai_forward.1} parent=11 // pred_check_branch
          %314 = sbr.rel (%p312) target = $region36
        $region35: #{wronai_forward.1} parent=11 // pred_region
          _
        $region36: #{wronai_forward.1} parent=11 // pred_fallthru
          _
        // Predicated region
        $region37: #{wronai_forward.1} parent=11 // pred_check
          %p315 = pneg %p193
        $region38: #{wronai_forward.1} parent=11 // pred_check_branch
          %317 = sbr.rel (%p315) target = $region40
        $region39: #{wronai_forward.1} parent=11 // pred_region
          _
        $region40: #{wronai_forward.1} parent=11 // pred_fallthru
          _
        // Predicated region
        $region41: #{wronai_forward.1} parent=11 // pred_check
          %p318 = pneg %p214
        $region42: #{wronai_forward.1} parent=11 // pred_check_branch
          %320 = sbr.rel (%p318) target = $region44
        $region43: #{wronai_forward.1} parent=11 // pred_region
          _
        $region44: #{wronai_forward.1} parent=11 // pred_fallthru
          _
        // Predicated region
        $region45: #{wronai_forward.1} parent=11 // pred_check
          %p321 = pneg %p235
        $region46: #{wronai_forward.1} parent=11 // pred_check_branch
          %323 = sbr.rel (%p321) target = $region48
        $region47: #{wronai_forward.1} parent=11 // pred_region
          _
        $region48: #{wronai_forward.1} parent=11 // pred_fallthru
          _
        // Predicated region
        $region49: #{wronai_forward.1} parent=11 // pred_check
          %p324 = pneg %p256
        $region50: #{wronai_forward.1} parent=11 // pred_check_branch
          %326 = sbr.rel (%p324) target = $region52
        $region51: #{wronai_forward.1} parent=11 // pred_region
          _
        $region52: #{wronai_forward.1} parent=11 // pred_fallthru
          _
      $region12: #{wronai_forward.1} parent=5 // pred_fallthru
        _
      %p327 = scmp.lt.s32.totalorder %s20, 2
      // Predicated region
      $region53: #{wronai_forward.1} parent=5 // pred_check
        %p328 = pneg %p327
      $region54: #{wronai_forward.1} parent=5 // pred_check_branch
        %330 = sbr.rel (%p328) target = $region56
      $region55: #{wronai_forward.1} parent=5 // pred_region
        // Predicated region
        $region57: #{wronai_forward.1} parent=55 // pred_check
          %p331 = pneg %p40
        $region58: #{wronai_forward.1} parent=55 // pred_check_branch
          %333 = sbr.rel (%p331) target = $region60
        $region59: #{wronai_forward.1} parent=55 // pred_region
          %p334 = scmp.lt.s32.totalorder %s20, 1
          %s335 = scalar_select %p334, %s20, 1
          %s336 = smul.addr %s335, 8
          %s337 = scalar_lea.vmem %s0, %s336
        $region60: #{wronai_forward.1} parent=55 // pred_fallthru
          _
      $region56: #{wronai_forward.1} parent=5 // pred_fallthru
        _
      %p338 = scmp.le.s32.totalorder 1, %s20
      %p339 = scmp.lt.s32.totalorder %s20, 3
      %p340 = pnand %p338, %p339
      %p341 = pneg %p340
      // Predicated region
      $region61: #{wronai_forward.1} parent=5 // pred_check
        _
      $region62: #{wronai_forward.1} parent=5 // pred_check_branch
        %343 = sbr.rel (%p340) target = $region64
      $region63: #{wronai_forward.1} parent=5 // pred_region
        %s344 = ssub.s32 %s20, 1
        %p345 = scmp.lt.s32.totalorder %s25, 1
        %s346 = scalar_select %p345, %s25, 1
        %s347 = smul.addr %s346, 8
        %s348 = scalar_lea.vmem %s0, %s347
        %p349 = pneg %p46
        %p350 = pneg %p43
        %p351 = pneg %p67
        %p352 = pneg %p64
        %p353 = pneg %p88
        %p354 = pneg %p85
        %p355 = pneg %p109
        %p356 = pneg %p106
        %p357 = pneg %p130
        %p358 = pneg %p127
        %p359 = pneg %p151
        %p360 = pneg %p148
        %p361 = pneg %p172
        %p362 = pneg %p169
        %p363 = pneg %p193
        %p364 = pneg %p190
        %p365 = pneg %p214
        %p366 = pneg %p211
        %p367 = pneg %p235
        %p368 = pneg %p232
        %p369 = pneg %p256
        %p370 = pneg %p253
        %p371 = pneg %p282
        %p372 = pneg %p279
        %s373 = sand.u32 %s269, 1
        %s374 = scalar_lea.sflag [#allocation3], %s373
        %s375 = sand.u32 %s269, 1
        %s376 = smul.addr %s375, 8
        %s377 = scalar_lea.vmem [#allocation2], %s376
        %p378 = scmp.lt.s32.totalorder %s25, 1
        %s379 = scalar_select %p378, %s25, 1
        %s380 = smul.addr %s379, 8
        %s381 = scalar_lea.vmem %s0, %s380
        %v383 = vld [vmem:[%s381] sm:$0xff]
        %v384 = vlaneseq
        %v385 = vand.u32 %v384, 127
        %386 = vset.pattern.permute.xlu0 0
        %387 = vperm.xlu0 %386, %v383
        %v388 = vpop.permute.xlu0 %387
        %vm389 = vcmp.eq.s32.totalorder %v388, %v385
        %v390 = vsel %vm389, 1, 0
        %v391 = vcvt.s32.f32 %v390
        %v392 = vpack.c.bf16 %v391, %v391
        %v393 = vld [vmem:[%s1] sm:$0xf]
        %v394 = vld [vmem:[%s1 + $0x4] sm:$0xf]
        %v395 = vld [vmem:[%s1 + $0x8] sm:$0xf]
        %v396 = vld [vmem:[%s1 + $0xc] sm:$0xf]
        %v397 = vld [vmem:[%s1 + $0x10] sm:$0xf]
        %v398 = vld [vmem:[%s1 + $0x14] sm:$0xf]
        %v399 = vld [vmem:[%s1 + $0x18] sm:$0xf]
        %v400 = vld [vmem:[%s1 + $0x1c] sm:$0xf]
        %v401 = vld [vmem:[%s1 + $0x20] sm:$0xf]
        %v402 = vld [vmem:[%s1 + $0x24] sm:$0xf]
        %v403 = vld [vmem:[%s1 + $0x28] sm:$0xf]
        %v404 = vld [vmem:[%s1 + $0x2c] sm:$0xf]
        %v405 = vld [vmem:[%s1 + $0x30] sm:$0xf]
        %v406 = vld [vmem:[%s1 + $0x34] sm:$0xf]
        %v407 = vld [vmem:[%s1 + $0x38] sm:$0xf]
        %v408 = vld [vmem:[%s1 + $0x3c] sm:$0xf]
        %v425 = vunpack.c.l.b16 %v393
        %v426 = vunpack.c.l.b16 %v394
        %v427 = vunpack.c.l.b16 %v395
        %v428 = vunpack.c.l.b16 %v396
        %v429 = vunpack.c.l.b16 %v397
        %v430 = vunpack.c.l.b16 %v398
        %v431 = vunpack.c.l.b16 %v399
        %v432 = vunpack.c.l.b16 %v400
        %v433 = vunpack.c.l.b16 %v401
        %v434 = vunpack.c.l.b16 %v402
        %v435 = vunpack.c.l.b16 %v403
        %v436 = vunpack.c.l.b16 %v404
        %v437 = vunpack.c.l.b16 %v405
        %v438 = vunpack.c.l.b16 %v406
        %v439 = vunpack.c.l.b16 %v407
        %v440 = vunpack.c.l.b16 %v408
        %v441 = vpack.c.b16 %v426, %v425
        %v442 = vpack.c.b16 %v428, %v427
        %v443 = vpack.c.b16 %v430, %v429
        %v444 = vpack.c.b16 %v432, %v431
        %v445 = vpack.c.b16 %v434, %v433
        %v446 = vpack.c.b16 %v436, %v435
        %v447 = vpack.c.b16 %v438, %v437
        %v448 = vpack.c.b16 %v440, %v439
        %457 = vmatprep.subr.bf16.mxu0 0
        %458 = vmatpush1.bf16.msra.mxu0 %v448
        %459 = vmatprep.subr.bf16.mxu0 0
        %460 = vmatpush1.bf16.msra.mxu0 %v447
        %461 = vmatprep.subr.bf16.mxu0 0
        %462 = vmatpush1.bf16.msra.mxu0 %v446
        %463 = vmatprep.subr.bf16.mxu0 0
        %464 = vmatpush1.bf16.msra.mxu0 %v445
        %465 = vmatprep.subr.bf16.mxu0 0
        %466 = vmatpush1.bf16.msra.mxu0 %v444
        %467 = vmatprep.subr.bf16.mxu0 0
        %468 = vmatpush1.bf16.msra.mxu0 %v443
        %469 = vmatprep.subr.bf16.mxu0 0
        %470 = vmatpush1.bf16.msra.mxu0 %v442
        %471 = vmatprep.subr.bf16.mxu0 0
        %472 = vmatpush1.bf16.msra.mxu0 %v441
        %473 = vmatprep.subr.bf16.mxu0 0
        %474 = vmatpush2.bf16.msra.mxu0 0
        %475 = vmatprep.subr.bf16.mxu0 0
        %476 = vmatpush2.bf16.msra.mxu0 0
        %477 = vmatprep.subr.bf16.mxu0 0
        %478 = vmatpush2.bf16.msra.mxu0 0
        %479 = vmatprep.subr.bf16.mxu0 0
        %480 = vmatpush2.bf16.msra.mxu0 0
        %481 = vmatprep.subr.bf16.mxu0 0
        %482 = vmatpush2.bf16.msra.mxu0 0
        %483 = vmatprep.subr.bf16.mxu0 0
        %484 = vmatpush2.bf16.msra.mxu0 0
        %485 = vmatprep.subr.bf16.mxu0 0
        %486 = vmatpush2.bf16.msra.mxu0 0
        %487 = vmatprep.subr.bf16.mxu0 0
        %488 = vmatpush2.bf16.msra.mxu0 0
        %489 = vmatprep.mubr.bf16.mxu0 0
        %490 = vmatmul.mubr.bf16.gmra.mxu0 %v392
        %v491 = vpop.f32.mrf.mxu0
        %v492 = vadd.f32 0.0, %v491
        %v493 = vpop.f32.mrf.mxu0
        %v494 = vpop.f32.mrf.mxu0
        %v495 = vpop.f32.mrf.mxu0
        %496 = vdwg.mxu0
        %v497 = vmul.f32 %v492, %v492
        %vm498 = vcmask 261120
        %v499 = vsel %vm498, %v497, 0.0
        %500 = vadd.xlane.f32.xlu0 %v499
        %v501 = vpop.xlane.xlu0 %500
        %v502 = vrcp.pop 32.0
        %v503 = vmul.f32 %v501, %v502
        %v504 = vadd.f32 %v503, 1e-06
        %v505 = vrsqrt.pop %v504
        %v506 = vmul.f32 %v492, %v505
        %v507 = vld [vmem:[%s2] sm:$0x1]
        %v508 = vunpack.c.l.bf16 %v507
        %v509 = vlaneseq
        %v510 = vshrl.u32 %v509, 7
        %v511 = vsub.s32 0, %v510
        %v512 = vrot.slane %v508, %v511
        %v513 = vmul.f32 %v506, %v512
        %v514 = vpack.c.bf16 %v513, %v513
        %v515 = vld [vmem:[%s3] sm:$0xf]
        %v516 = vld [vmem:[%s3 + $0x4] sm:$0xf]
        %v517 = vld [vmem:[%s3 + $0x8] sm:$0xf]
        %v518 = vld [vmem:[%s3 + $0xc] sm:$0xf]
        %v519 = vld [vmem:[%s3 + $0x10] sm:$0xf]
        %v520 = vld [vmem:[%s3 + $0x14] sm:$0xf]
        %v521 = vld [vmem:[%s3 + $0x18] sm:$0xf]
        %v522 = vld [vmem:[%s3 + $0x1c] sm:$0xf]
        %v523 = vld [vmem:[%s3 + $0x20] sm:$0xf]
        %v524 = vld [vmem:[%s3 + $0x24] sm:$0xf]
        %v525 = vld [vmem:[%s3 + $0x28] sm:$0xf]
        %v526 = vld [vmem:[%s3 + $0x2c] sm:$0xf]
        %v527 = vld [vmem:[%s3 + $0x30] sm:$0xf]
        %v528 = vld [vmem:[%s3 + $0x34] sm:$0xf]
        %v529 = vld [vmem:[%s3 + $0x38] sm:$0xf]
        %v530 = vld [vmem:[%s3 + $0x3c] sm:$0xf]
        %v531 = vld [vmem:[%s3 + $0x40] sm:$0xf]
        %v532 = vld [vmem:[%s3 + $0x44] sm:$0xf]
        %v533 = vld [vmem:[%s3 + $0x48] sm:$0xf]
        %v534 = vld [vmem:[%s3 + $0x4c] sm:$0xf]
        %v535 = vld [vmem:[%s3 + $0x50] sm:$0xf]
        %v536 = vld [vmem:[%s3 + $0x54] sm:$0xf]
        %v537 = vld [vmem:[%s3 + $0x58] sm:$0xf]
        %v538 = vld [vmem:[%s3 + $0x5c] sm:$0xf]
        %v543 = vunpack.c.l.b16 %v515
        %v544 = vunpack.c.l.b16 %v516
        %v545 = vunpack.c.l.b16 %v517
        %v546 = vunpack.c.l.b16 %v518
        %v547 = vpack.c.b16 %v544, %v543
        %v548 = vpack.c.b16 %v546, %v545
        %v552 = vsel %vm498, %v514, 0
        %554 = vmatprep.subr.bf16.mxu0 0
        %555 = vmatpush1.bf16.msra.mxu0 0
        %556 = vmatprep.subr.bf16.mxu0 0
        %557 = vmatpush1.bf16.msra.mxu0 0
        %558 = vmatprep.subr.bf16.mxu0 0
        %559 = vmatpush1.bf16.msra.mxu0 0
        %560 = vmatprep.subr.bf16.mxu0 0
        %561 = vmatpush1.bf16.msra.mxu0 0
        %562 = vmatprep.subr.bf16.mxu0 0
        %563 = vmatpush1.bf16.msra.mxu0 0
        %564 = vmatprep.subr.bf16.mxu0 0
        %565 = vmatpush1.bf16.msra.mxu0 0
        %566 = vmatprep.subr.bf16.mxu0 0
        %567 = vmatpush1.bf16.msra.mxu0 %v548
        %568 = vmatprep.subr.bf16.mxu0 0
        %569 = vmatpush1.bf16.msra.mxu0 %v547
        %570 = vmatprep.subr.bf16.mxu0 0
        %571 = vmatpush2.bf16.msra.mxu0 0
        %572 = vmatprep.subr.bf16.mxu0 0
        %573 = vmatpush2.bf16.msra.mxu0 0
        %574 = vmatprep.subr.bf16.mxu0 0
        %575 = vmatpush2.bf16.msra.mxu0 0
        %576 = vmatprep.subr.bf16.mxu0 0
        %577 = vmatpush2.bf16.msra.mxu0 0
        %578 = vmatprep.subr.bf16.mxu0 0
        %579 = vmatpush2.bf16.msra.mxu0 0
        %580 = vmatprep.subr.bf16.mxu0 0
        %581 = vmatpush2.bf16.msra.mxu0 0
        %582 = vmatprep.subr.bf16.mxu0 0
        %583 = vmatpush2.bf16.msra.mxu0 0
        %584 = vmatprep.subr.bf16.mxu0 0
        %585 = vmatpush2.bf16.msra.mxu0 0
        %586 = vmatprep.mubr.bf16.mxu0 0
        %587 = vmatmul.mubr.bf16.gmra.mxu0 %v552
        %v588 = vpop.f32.mrf.mxu0
        %v589 = vadd.f32 0.0, %v588
        %v590 = vpop.f32.mrf.mxu0
        %v591 = vpop.f32.mrf.mxu0
        %v592 = vpop.f32.mrf.mxu0
        %593 = vdwg.mxu0
        %v598 = vunpack.c.l.b16 %v519
        %v599 = vunpack.c.l.b16 %v520
        %v600 = vunpack.c.l.b16 %v521
        %v601 = vunpack.c.l.b16 %v522
        %v602 = vpack.c.b16 %v599, %v598
        %v603 = vpack.c.b16 %v601, %v600
        %606 = vmatprep.subr.bf16.mxu0 0
        %607 = vmatpush1.bf16.msra.mxu0 0
        %608 = vmatprep.subr.bf16.mxu0 0
        %609 = vmatpush1.bf16.msra.mxu0 0
        %610 = vmatprep.subr.bf16.mxu0 0
        %611 = vmatpush1.bf16.msra.mxu0 0
        %612 = vmatprep.subr.bf16.mxu0 0
        %613 = vmatpush1.bf16.msra.mxu0 0
        %614 = vmatprep.subr.bf16.mxu0 0
        %615 = vmatpush1.bf16.msra.mxu0 0
        %616 = vmatprep.subr.bf16.mxu0 0
        %617 = vmatpush1.bf16.msra.mxu0 0
        %618 = vmatprep.subr.bf16.mxu0 0
        %619 = vmatpush1.bf16.msra.mxu0 %v603
        %620 = vmatprep.subr.bf16.mxu0 0
        %621 = vmatpush1.bf16.msra.mxu0 %v602
        %622 = vmatprep.subr.bf16.mxu0 0
        %623 = vmatpush2.bf16.msra.mxu0 0
        %624 = vmatprep.subr.bf16.mxu0 0
        %625 = vmatpush2.bf16.msra.mxu0 0
        %626 = vmatprep.subr.bf16.mxu0 0
        %627 = vmatpush2.bf16.msra.mxu0 0
        %628 = vmatprep.subr.bf16.mxu0 0
        %629 = vmatpush2.bf16.msra.mxu0 0
        %630 = vmatprep.subr.bf16.mxu0 0
        %631 = vmatpush2.bf16.msra.mxu0 0
        %632 = vmatprep.subr.bf16.mxu0 0
        %633 = vmatpush2.bf16.msra.mxu0 0
        %634 = vmatprep.subr.bf16.mxu0 0
        %635 = vmatpush2.bf16.msra.mxu0 0
        %636 = vmatprep.subr.bf16.mxu0 0
        %637 = vmatpush2.bf16.msra.mxu0 0
        %638 = vmatprep.mubr.bf16.mxu0 0
        %639 = vmatmul.mubr.bf16.gmra.mxu0 %v552
        %v640 = vpop.f32.mrf.mxu0
        %v641 = vadd.f32 0.0, %v640
        %v642 = vpop.f32.mrf.mxu0
        %v643 = vpop.f32.mrf.mxu0
        %v644 = vpop.f32.mrf.mxu0
        %645 = vdwg.mxu0
        %v650 = vunpack.c.l.b16 %v523
        %v651 = vunpack.c.l.b16 %v524
        %v652 = vunpack.c.l.b16 %v525
        %v653 = vunpack.c.l.b16 %v526
        %v654 = vpack.c.b16 %v651, %v650
        %v655 = vpack.c.b16 %v653, %v652
        %658 = vmatprep.subr.bf16.mxu0 0
        %659 = vmatpush1.bf16.msra.mxu0 0
        %660 = vmatprep.subr.bf16.mxu0 0
        %661 = vmatpush1.bf16.msra.mxu0 0
        %662 = vmatprep.subr.bf16.mxu0 0
        %663 = vmatpush1.bf16.msra.mxu0 0
        %664 = vmatprep.subr.bf16.mxu0 0
        %665 = vmatpush1.bf16.msra.mxu0 0
        %666 = vmatprep.subr.bf16.mxu0 0
        %667 = vmatpush1.bf16.msra.mxu0 0
        %668 = vmatprep.subr.bf16.mxu0 0
        %669 = vmatpush1.bf16.msra.mxu0 0
        %670 = vmatprep.subr.bf16.mxu0 0
        %671 = vmatpush1.bf16.msra.mxu0 %v655
        %672 = vmatprep.subr.bf16.mxu0 0
        %673 = vmatpush1.bf16.msra.mxu0 %v654
        %674 = vmatprep.subr.bf16.mxu0 0
        %675 = vmatpush2.bf16.msra.mxu0 0
        %676 = vmatprep.subr.bf16.mxu0 0
        %677 = vmatpush2.bf16.msra.mxu0 0
        %678 = vmatprep.subr.bf16.mxu0 0
        %679 = vmatpush2.bf16.msra.mxu0 0
        %680 = vmatprep.subr.bf16.mxu0 0
        %681 = vmatpush2.bf16.msra.mxu0 0
        %682 = vmatprep.subr.bf16.mxu0 0
        %683 = vmatpush2.bf16.msra.mxu0 0
        %684 = vmatprep.subr.bf16.mxu0 0
        %685 = vmatpush2.bf16.msra.mxu0 0
        %686 = vmatprep.subr.bf16.mxu0 0
        %687 = vmatpush2.bf16.msra.mxu0 0
        %688 = vmatprep.subr.bf16.mxu0 0
        %689 = vmatpush2.bf16.msra.mxu0 0
        %690 = vmatprep.mubr.bf16.mxu0 0
        %691 = vmatmul.mubr.bf16.gmra.mxu0 %v552
        %v692 = vpop.f32.mrf.mxu0
        %v693 = vadd.f32 0.0, %v692
        %v694 = vpop.f32.mrf.mxu0
        %v695 = vpop.f32.mrf.mxu0
        %v696 = vpop.f32.mrf.mxu0
        %697 = vdwg.mxu0
        %v702 = vunpack.c.l.b16 %v527
        %v703 = vunpack.c.l.b16 %v528
        %v704 = vunpack.c.l.b16 %v529
        %v705 = vunpack.c.l.b16 %v530
        %v706 = vpack.c.b16 %v703, %v702
        %v707 = vpack.c.b16 %v705, %v704
        %710 = vmatprep.subr.bf16.mxu0 0
        %711 = vmatpush1.bf16.msra.mxu0 0
        %712 = vmatprep.subr.bf16.mxu0 0
        %713 = vmatpush1.bf16.msra.mxu0 0
        %714 = vmatprep.subr.bf16.mxu0 0
        %715 = vmatpush1.bf16.msra.mxu0 0
        %716 = vmatprep.subr.bf16.mxu0 0
        %717 = vmatpush1.bf16.msra.mxu0 0
        %718 = vmatprep.subr.bf16.mxu0 0
        %719 = vmatpush1.bf16.msra.mxu0 0
        %720 = vmatprep.subr.bf16.mxu0 0
        %721 = vmatpush1.bf16.msra.mxu0 0
        %722 = vmatprep.subr.bf16.mxu0 0
        %723 = vmatpush1.bf16.msra.mxu0 %v707
        %724 = vmatprep.subr.bf16.mxu0 0
        %725 = vmatpush1.bf16.msra.mxu0 %v706
        %726 = vmatprep.subr.bf16.mxu0 0
        %727 = vmatpush2.bf16.msra.mxu0 0
        %728 = vmatprep.subr.bf16.mxu0 0
        %729 = vmatpush2.bf16.msra.mxu0 0
        %730 = vmatprep.subr.bf16.mxu0 0
        %731 = vmatpush2.bf16.msra.mxu0 0
        %732 = vmatprep.subr.bf16.mxu0 0
        %733 = vmatpush2.bf16.msra.mxu0 0
        %734 = vmatprep.subr.bf16.mxu0 0
        %735 = vmatpush2.bf16.msra.mxu0 0
        %736 = vmatprep.subr.bf16.mxu0 0
        %737 = vmatpush2.bf16.msra.mxu0 0
        %738 = vmatprep.subr.bf16.mxu0 0
        %739 = vmatpush2.bf16.msra.mxu0 0
        %740 = vmatprep.subr.bf16.mxu0 0
        %741 = vmatpush2.bf16.msra.mxu0 0
        %742 = vmatprep.mubr.bf16.mxu0 0
        %743 = vmatmul.mubr.bf16.gmra.mxu0 %v552
        %v744 = vpop.f32.mrf.mxu0
        %v745 = vadd.f32 0.0, %v744
        %v746 = vpop.f32.mrf.mxu0
        %v747 = vpop.f32.mrf.mxu0
        %v748 = vpop.f32.mrf.mxu0
        %749 = vdwg.mxu0
        %v754 = vunpack.c.l.b16 %v531
        %v755 = vunpack.c.l.b16 %v532
        %v756 = vunpack.c.l.b16 %v533
        %v757 = vunpack.c.l.b16 %v534
        %v758 = vpack.c.b16 %v755, %v754
        %v759 = vpack.c.b16 %v757, %v756
        %762 = vmatprep.subr.bf16.mxu0 0
        %763 = vmatpush1.bf16.msra.mxu0 0
        %764 = vmatprep.subr.bf16.mxu0 0
        %765 = vmatpush1.bf16.msra.mxu0 0
        %766 = vmatprep.subr.bf16.mxu0 0
        %767 = vmatpush1.bf16.msra.mxu0 0
        %768 = vmatprep.subr.bf16.mxu0 0
        %769 = vmatpush1.bf16.msra.mxu0 0
        %770 = vmatprep.subr.bf16.mxu0 0
        %771 = vmatpush1.bf16.msra.mxu0 0
        %772 = vmatprep.subr.bf16.mxu0 0
        %773 = vmatpush1.bf16.msra.mxu0 0
        %774 = vmatprep.subr.bf16.mxu0 0
        %775 = vmatpush1.bf16.msra.mxu0 %v759
        %776 = vmatprep.subr.bf16.mxu0 0
        %777 = vmatpush1.bf16.msra.mxu0 %v758
        %778 = vmatprep.subr.bf16.mxu0 0
        %779 = vmatpush2.bf16.msra.mxu0 0
        %780 = vmatprep.subr.bf16.mxu0 0
        %781 = vmatpush2.bf16.msra.mxu0 0
        %782 = vmatprep.subr.bf16.mxu0 0
        %783 = vmatpush2.bf16.msra.mxu0 0
        %784 = vmatprep.subr.bf16.mxu0 0
        %785 = vmatpush2.bf16.msra.mxu0 0
        %786 = vmatprep.subr.bf16.mxu0 0
        %787 = vmatpush2.bf16.msra.mxu0 0
        %788 = vmatprep.subr.bf16.mxu0 0
        %789 = vmatpush2.bf16.msra.mxu0 0
        %790 = vmatprep.subr.bf16.mxu0 0
        %791 = vmatpush2.bf16.msra.mxu0 0
        %792 = vmatprep.subr.bf16.mxu0 0
        %793 = vmatpush2.bf16.msra.mxu0 0
        %794 = vmatprep.mubr.bf16.mxu0 0
        %795 = vmatmul.mubr.bf16.gmra.mxu0 %v552
        %v796 = vpop.f32.mrf.mxu0
        %v797 = vadd.f32 0.0, %v796
        %v798 = vpop.f32.mrf.mxu0
        %v799 = vpop.f32.mrf.mxu0
        %v800 = vpop.f32.mrf.mxu0
        %801 = vdwg.mxu0
        %v806 = vunpack.c.l.b16 %v535
        %v807 = vunpack.c.l.b16 %v536
        %v808 = vunpack.c.l.b16 %v537
        %v809 = vunpack.c.l.b16 %v538
        %v810 = vpack.c.b16 %v807, %v806
        %v811 = vpack.c.b16 %v809, %v808
        %814 = vmatprep.subr.bf16.mxu0 0
        %815 = vmatpush1.bf16.msra.mxu0 0
        %816 = vmatprep.subr.bf16.mxu0 0
        %817 = vmatpush1.bf16.msra.mxu0 0
        %818 = vmatprep.subr.bf16.mxu0 0
        %819 = vmatpush1.bf16.msra.mxu0 0
        %820 = vmatprep.subr.bf16.mxu0 0
        %821 = vmatpush1.bf16.msra.mxu0 0
        %822 = vmatprep.subr.bf16.mxu0 0
        %823 = vmatpush1.bf16.msra.mxu0 0
        %824 = vmatprep.subr.bf16.mxu0 0
        %825 = vmatpush1.bf16.msra.mxu0 0
        %826 = vmatprep.subr.bf16.mxu0 0
        %827 = vmatpush1.bf16.msra.mxu0 %v811
        %828 = vmatprep.subr.bf16.mxu0 0
        %829 = vmatpush1.bf16.msra.mxu0 %v810
        %830 = vmatprep.subr.bf16.mxu0 0
        %831 = vmatpush2.bf16.msra.mxu0 0
        %832 = vmatprep.subr.bf16.mxu0 0
        %833 = vmatpush2.bf16.msra.mxu0 0
        %834 = vmatprep.subr.bf16.mxu0 0
        %835 = vmatpush2.bf16.msra.mxu0 0
        %836 = vmatprep.subr.bf16.mxu0 0
        %837 = vmatpush2.bf16.msra.mxu0 0
        %838 = vmatprep.subr.bf16.mxu0 0
        %839 = vmatpush2.bf16.msra.mxu0 0
        %840 = vmatprep.subr.bf16.mxu0 0
        %841 = vmatpush2.bf16.msra.mxu0 0
        %842 = vmatprep.subr.bf16.mxu0 0
        %843 = vmatpush2.bf16.msra.mxu0 0
        %844 = vmatprep.subr.bf16.mxu0 0
        %845 = vmatpush2.bf16.msra.mxu0 0
        %846 = vmatprep.mubr.bf16.mxu0 0
        %847 = vmatmul.mubr.bf16.gmra.mxu0 %v552
        %v848 = vpop.f32.mrf.mxu0
        %v849 = vadd.f32 0.0, %v848
        %v850 = vpop.f32.mrf.mxu0
        %v851 = vpop.f32.mrf.mxu0
        %v852 = vpop.f32.mrf.mxu0
        %853 = vdwg.mxu0
        %v854 = vpack.c.bf16 %v589, %v589
        %v855 = vpack.c.bf16 %v641, %v641
        %v856 = vpack.c.bf16 %v693, %v693
        %v857 = vpack.c.bf16 %v745, %v745
        %v858 = vpack.c.bf16 %v797, %v797
        %v859 = vpack.c.bf16 %v849, %v849
        %vm860 = vcmask 130048
        %v862 = vsel %vm860, %v854, 0
        %v865 = vsel %vm860, %v856, 0
        %867 = vmatprep.subr.bf16.mxu0 0
        %868 = vmatpush1.bf16.xpose.msra.mxu0 0
        %869 = vmatprep.subr.bf16.mxu0 0
        %870 = vmatpush1.bf16.xpose.msra.mxu0 0
        %871 = vmatprep.subr.bf16.mxu0 0
        %872 = vmatpush1.bf16.xpose.msra.mxu0 0
        %873 = vmatprep.subr.bf16.mxu0 0
        %874 = vmatpush1.bf16.xpose.msra.mxu0 0
        %875 = vmatprep.subr.bf16.mxu0 0
        %876 = vmatpush1.bf16.xpose.msra.mxu0 0
        %877 = vmatprep.subr.bf16.mxu0 0
        %878 = vmatpush1.bf16.xpose.msra.mxu0 0
        %879 = vmatprep.subr.bf16.mxu0 0
        %880 = vmatpush1.bf16.xpose.msra.mxu0 0
        %881 = vmatprep.subr.bf16.mxu0 0
        %882 = vmatpush1.bf16.xpose.msra.mxu0 %v865
        %883 = vmatprep.subr.bf16.mxu0 0
        %884 = vmatpush2.bf16.xpose.msra.mxu0 0
        %885 = vmatprep.subr.bf16.mxu0 0
        %886 = vmatpush2.bf16.xpose.msra.mxu0 0
        %887 = vmatprep.subr.bf16.mxu0 0
        %888 = vmatpush2.bf16.xpose.msra.mxu0 0
        %889 = vmatprep.subr.bf16.mxu0 0
        %890 = vmatpush2.bf16.xpose.msra.mxu0 0
        %891 = vmatprep.subr.bf16.mxu0 0
        %892 = vmatpush2.bf16.xpose.msra.mxu0 0
        %893 = vmatprep.subr.bf16.mxu0 0
        %894 = vmatpush2.bf16.xpose.msra.mxu0 0
        %895 = vmatprep.subr.bf16.mxu0 0
        %896 = vmatpush2.bf16.xpose.msra.mxu0 0
        %897 = vmatprep.subr.bf16.mxu0 0
        %898 = vmatpush2.bf16.xpose.msra.mxu0 0
        %899 = vmatprep.mubr.bf16.mxu0 0
        %900 = vmatmul.mubr.bf16.gmra.mxu0 %v862
        %v901 = vpop.f32.mrf.mxu0
        %v902 = vadd.f32 0.0, %v901
        %v903 = vpop.f32.mrf.mxu0
        %v904 = vpop.f32.mrf.mxu0
        %v905 = vpop.f32.mrf.mxu0
        %906 = vdwg.mxu0
        %v908 = vsel %vm860, %v855, 0
        %v911 = vsel %vm860, %v857, 0
        %913 = vmatprep.subr.bf16.mxu0 0
        %914 = vmatpush1.bf16.xpose.msra.mxu0 0
        %915 = vmatprep.subr.bf16.mxu0 0
        %916 = vmatpush1.bf16.xpose.msra.mxu0 0
        %917 = vmatprep.subr.bf16.mxu0 0
        %918 = vmatpush1.bf16.xpose.msra.mxu0 0
        %919 = vmatprep.subr.bf16.mxu0 0
        %920 = vmatpush1.bf16.xpose.msra.mxu0 0
        %921 = vmatprep.subr.bf16.mxu0 0
        %922 = vmatpush1.bf16.xpose.msra.mxu0 0
        %923 = vmatprep.subr.bf16.mxu0 0
        %924 = vmatpush1.bf16.xpose.msra.mxu0 0
        %925 = vmatprep.subr.bf16.mxu0 0
        %926 = vmatpush1.bf16.xpose.msra.mxu0 0
        %927 = vmatprep.subr.bf16.mxu0 0
        %928 = vmatpush1.bf16.xpose.msra.mxu0 %v911
        %929 = vmatprep.subr.bf16.mxu0 0
        %930 = vmatpush2.bf16.xpose.msra.mxu0 0
        %931 = vmatprep.subr.bf16.mxu0 0
        %932 = vmatpush2.bf16.xpose.msra.mxu0 0
        %933 = vmatprep.subr.bf16.mxu0 0
        %934 = vmatpush2.bf16.xpose.msra.mxu0 0
        %935 = vmatprep.subr.bf16.mxu0 0
        %936 = vmatpush2.bf16.xpose.msra.mxu0 0
        %937 = vmatprep.subr.bf16.mxu0 0
        %938 = vmatpush2.bf16.xpose.msra.mxu0 0
        %939 = vmatprep.subr.bf16.mxu0 0
        %940 = vmatpush2.bf16.xpose.msra.mxu0 0
        %941 = vmatprep.subr.bf16.mxu0 0
        %942 = vmatpush2.bf16.xpose.msra.mxu0 0
        %943 = vmatprep.subr.bf16.mxu0 0
        %944 = vmatpush2.bf16.xpose.msra.mxu0 0
        %945 = vmatprep.mubr.bf16.mxu0 0
        %946 = vmatmul.mubr.bf16.gmra.mxu0 %v908
        %v947 = vpop.f32.mrf.mxu0
        %v948 = vadd.f32 0.0, %v947
        %v949 = vpop.f32.mrf.mxu0
        %v950 = vpop.f32.mrf.mxu0
        %v951 = vpop.f32.mrf.mxu0
        %952 = vdwg.mxu0
        %v953 = vmul.f32 %v902, 0.25
        %v954 = vmul.f32 %v948, 0.25
        %v955 = vlaneseq
        %v956 = vshrl.u32 %v955, 7
        %vm957 = vcmp.le.s32.totalorder %v385, %v956
        %v958 = vsel %vm957, %v953, -1e+30
        %v959 = vsel %vm957, %v954, -1e+30
        %vm960 = vcmask 64512
        %v961 = vsel %vm960, %v958, -inf
        %962 = vmax.xlane.f32.xlu0 %v961
        %v963 = vpop.xlane.xlu0 %962
        %v964 = vsel %vm960, %v959, -inf
        %965 = vmax.xlane.f32.xlu0 %v964
        %v966 = vpop.xlane.xlu0 %965
        %v967 = vsub.f32 %v958, %v963
        %v968 = vsub.f32 %v959, %v966
        %v969 = vmul.f32 %v967, 1.442695
        %v970 = vpow.pop %v969
        %v971 = vmul.f32 %v968, 1.442695
        %v972 = vpow.pop %v971
        %v973 = vsel %vm960, %v970, 0.0
        %974 = vadd.xlane.f32.xlu0 %v973
        %v975 = vpop.xlane.xlu0 %974
        %v976 = vsel %vm960, %v972, 0.0
        %977 = vadd.xlane.f32.xlu0 %v976
        %v978 = vpop.xlane.xlu0 %977
        %v979 = vrcp.pop %v975
        %v980 = vrcp.pop %v978
        %v981 = vmul.f32 %v970, %v979
        %v982 = vmul.f32 %v972, %v980
        %v983 = vpack.c.bf16 %v981, %v981
        %v984 = vpack.c.bf16 %v982, %v982
        %v986 = vsel %vm960, %v983, 0
        %vm988 = vcmask 1043456
        %v990 = vsel %vm988, %v858, 0
        %992 = vmatprep.subr.bf16.mxu0 0
        %993 = vmatpush1.bf16.msra.mxu0 0
        %994 = vmatprep.subr.bf16.mxu0 0
        %995 = vmatpush1.bf16.msra.mxu0 0
        %996 = vmatprep.subr.bf16.mxu0 0
        %997 = vmatpush1.bf16.msra.mxu0 0
        %998 = vmatprep.subr.bf16.mxu0 0
        %999 = vmatpush1.bf16.msra.mxu0 0
        %1000 = vmatprep.subr.bf16.mxu0 0
        %1001 = vmatpush1.bf16.msra.mxu0 0
        %1002 = vmatprep.subr.bf16.mxu0 0
        %1003 = vmatpush1.bf16.msra.mxu0 0
        %1004 = vmatprep.subr.bf16.mxu0 0
        %1005 = vmatpush1.bf16.msra.mxu0 0
        %1006 = vmatprep.subr.bf16.mxu0 0
        %1007 = vmatpush1.bf16.msra.mxu0 %v990
        %1008 = vmatprep.subr.bf16.mxu0 0
        %1009 = vmatpush2.bf16.msra.mxu0 0
        %1010 = vmatprep.subr.bf16.mxu0 0
        %1011 = vmatpush2.bf16.msra.mxu0 0
        %1012 = vmatprep.subr.bf16.mxu0 0
        %1013 = vmatpush2.bf16.msra.mxu0 0
        %1014 = vmatprep.subr.bf16.mxu0 0
        %1015 = vmatpush2.bf16.msra.mxu0 0
        %1016 = vmatprep.subr.bf16.mxu0 0
        %1017 = vmatpush2.bf16.msra.mxu0 0
        %1018 = vmatprep.subr.bf16.mxu0 0
        %1019 = vmatpush2.bf16.msra.mxu0 0
        %1020 = vmatprep.subr.bf16.mxu0 0
        %1021 = vmatpush2.bf16.msra.mxu0 0
        %1022 = vmatprep.subr.bf16.mxu0 0
        %1023 = vmatpush2.bf16.msra.mxu0 0
        %1024 = vmatprep.mubr.bf16.mxu0 0
        %1025 = vmatmul.mubr.bf16.gmra.mxu0 %v986
        %v1026 = vpop.f32.mrf.mxu0
        %v1027 = vadd.f32 0.0, %v1026
        %v1028 = vpop.f32.mrf.mxu0
        %v1029 = vpop.f32.mrf.mxu0
        %v1030 = vpop.f32.mrf.mxu0
        %1031 = vdwg.mxu0
        %v1033 = vsel %vm960, %v984, 0
        %v1036 = vsel %vm988, %v859, 0
        %1038 = vmatprep.subr.bf16.mxu0 0
        %1039 = vmatpush1.bf16.msra.mxu0 0
        %1040 = vmatprep.subr.bf16.mxu0 0
        %1041 = vmatpush1.bf16.msra.mxu0 0
        %1042 = vmatprep.subr.bf16.mxu0 0
        %1043 = vmatpush1.bf16.msra.mxu0 0
        %1044 = vmatprep.subr.bf16.mxu0 0
        %1045 = vmatpush1.bf16.msra.mxu0 0
        %1046 = vmatprep.subr.bf16.mxu0 0
        %1047 = vmatpush1.bf16.msra.mxu0 0
        %1048 = vmatprep.subr.bf16.mxu0 0
        %1049 = vmatpush1.bf16.msra.mxu0 0
        %1050 = vmatprep.subr.bf16.mxu0 0
        %1051 = vmatpush1.bf16.msra.mxu0 0
        %1052 = vmatprep.subr.bf16.mxu0 0
        %1053 = vmatpush1.bf16.msra.mxu0 %v1036
        %1054 = vmatprep.subr.bf16.mxu0 0
        %1055 = vmatpush2.bf16.msra.mxu0 0
        %1056 = vmatprep.subr.bf16.mxu0 0
        %1057 = vmatpush2.bf16.msra.mxu0 0
        %1058 = vmatprep.subr.bf16.mxu0 0
        %1059 = vmatpush2.bf16.msra.mxu0 0
        %1060 = vmatprep.subr.bf16.mxu0 0
        %1061 = vmatpush2.bf16.msra.mxu0 0
        %1062 = vmatprep.subr.bf16.mxu0 0
        %1063 = vmatpush2.bf16.msra.mxu0 0
        %1064 = vmatprep.subr.bf16.mxu0 0
        %1065 = vmatpush2.bf16.msra.mxu0 0
        %1066 = vmatprep.subr.bf16.mxu0 0
        %1067 = vmatpush2.bf16.msra.mxu0 0
        %1068 = vmatprep.subr.bf16.mxu0 0
        %1069 = vmatpush2.bf16.msra.mxu0 0
        %1070 = vmatprep.mubr.bf16.mxu0 0
        %1071 = vmatmul.mubr.bf16.gmra.mxu0 %v1033
        %v1072 = vpop.f32.mrf.mxu0
        %v1073 = vadd.f32 0.0, %v1072
        %v1074 = vpop.f32.mrf.mxu0
        %v1075 = vpop.f32.mrf.mxu0
        %v1076 = vpop.f32.mrf.mxu0
        %1077 = vdwg.mxu0
        %v1078 = vpack.c.bf16 %v1027, %v1027
        %v1079 = vpack.c.bf16 %v1073, %v1073
        %v1080 = vld [vmem:[%s4] sm:$0xf]
        %v1081 = vld [vmem:[%s4 + $0x4] sm:$0xf]
        %v1082 = vld [vmem:[%s4 + $0x8] sm:$0xf]
        %v1083 = vld [vmem:[%s4 + $0xc] sm:$0xf]
        %v1086 = vunpack.c.l.b16 %v1080
        %v1087 = vunpack.c.l.b16 %v1081
        %v1088 = vpack.c.b16 %v1087, %v1086
        %v1091 = vsel %vm860, %v1078, 0
        %1093 = vmatprep.subr.bf16.mxu0 0
        %1094 = vmatpush1.bf16.msra.mxu0 0
        %1095 = vmatprep.subr.bf16.mxu0 0
        %1096 = vmatpush1.bf16.msra.mxu0 0
        %1097 = vmatprep.subr.bf16.mxu0 0
        %1098 = vmatpush1.bf16.msra.mxu0 0
        %1099 = vmatprep.subr.bf16.mxu0 0
        %1100 = vmatpush1.bf16.msra.mxu0 0
        %1101 = vmatprep.subr.bf16.mxu0 0
        %1102 = vmatpush1.bf16.msra.mxu0 0
        %1103 = vmatprep.subr.bf16.mxu0 0
        %1104 = vmatpush1.bf16.msra.mxu0 0
        %1105 = vmatprep.subr.bf16.mxu0 0
        %1106 = vmatpush1.bf16.msra.mxu0 0
        %1107 = vmatprep.subr.bf16.mxu0 0
        %1108 = vmatpush1.bf16.msra.mxu0 %v1088
        %1109 = vmatprep.subr.bf16.mxu0 0
        %1110 = vmatpush2.bf16.msra.mxu0 0
        %1111 = vmatprep.subr.bf16.mxu0 0
        %1112 = vmatpush2.bf16.msra.mxu0 0
        %1113 = vmatprep.subr.bf16.mxu0 0
        %1114 = vmatpush2.bf16.msra.mxu0 0
        %1115 = vmatprep.subr.bf16.mxu0 0
        %1116 = vmatpush2.bf16.msra.mxu0 0
        %1117 = vmatprep.subr.bf16.mxu0 0
        %1118 = vmatpush2.bf16.msra.mxu0 0
        %1119 = vmatprep.subr.bf16.mxu0 0
        %1120 = vmatpush2.bf16.msra.mxu0 0
        %1121 = vmatprep.subr.bf16.mxu0 0
        %1122 = vmatpush2.bf16.msra.mxu0 0
        %1123 = vmatprep.subr.bf16.mxu0 0
        %1124 = vmatpush2.bf16.msra.mxu0 0
        %1125 = vmatprep.mubr.bf16.mxu0 0
        %1126 = vmatmul.mubr.bf16.gmra.mxu0 %v1091
        %v1127 = vpop.f32.mrf.mxu0
        %v1128 = vadd.f32 0.0, %v1127
        %v1129 = vpop.f32.mrf.mxu0
        %v1130 = vpop.f32.mrf.mxu0
        %v1131 = vpop.f32.mrf.mxu0
        %1132 = vdwg.mxu0
        %v1135 = vunpack.c.l.b16 %v1082
        %v1136 = vunpack.c.l.b16 %v1083
        %v1137 = vpack.c.b16 %v1136, %v1135
        %v1140 = vsel %vm860, %v1079, 0
        %1142 = vmatprep.subr.bf16.mxu0 0
        %1143 = vmatpush1.bf16.msra.mxu0 0
        %1144 = vmatprep.subr.bf16.mxu0 0
        %1145 = vmatpush1.bf16.msra.mxu0 0
        %1146 = vmatprep.subr.bf16.mxu0 0
        %1147 = vmatpush1.bf16.msra.mxu0 0
        %1148 = vmatprep.subr.bf16.mxu0 0
        %1149 = vmatpush1.bf16.msra.mxu0 0
        %1150 = vmatprep.subr.bf16.mxu0 0
        %1151 = vmatpush1.bf16.msra.mxu0 0
        %1152 = vmatprep.subr.bf16.mxu0 0
        %1153 = vmatpush1.bf16.msra.mxu0 0
        %1154 = vmatprep.subr.bf16.mxu0 0
        %1155 = vmatpush1.bf16.msra.mxu0 0
        %1156 = vmatprep.subr.bf16.mxu0 0
        %1157 = vmatpush1.bf16.msra.mxu0 %v1137
        %1158 = vmatprep.subr.bf16.mxu0 0
        %1159 = vmatpush2.bf16.msra.mxu0 0
        %1160 = vmatprep.subr.bf16.mxu0 0
        %1161 = vmatpush2.bf16.msra.mxu0 0
        %1162 = vmatprep.subr.bf16.mxu0 0
        %1163 = vmatpush2.bf16.msra.mxu0 0
        %1164 = vmatprep.subr.bf16.mxu0 0
        %1165 = vmatpush2.bf16.msra.mxu0 0
        %1166 = vmatprep.subr.bf16.mxu0 0
        %1167 = vmatpush2.bf16.msra.mxu0 0
        %1168 = vmatprep.subr.bf16.mxu0 0
        %1169 = vmatpush2.bf16.msra.mxu0 0
        %1170 = vmatprep.subr.bf16.mxu0 0
        %1171 = vmatpush2.bf16.msra.mxu0 0
        %1172 = vmatprep.subr.bf16.mxu0 0
        %1173 = vmatpush2.bf16.msra.mxu0 0
        %1174 = vmatprep.mubr.bf16.mxu0 0
        %1175 = vmatmul.mubr.bf16.gmra.mxu0 %v1140
        %v1176 = vpop.f32.mrf.mxu0
        %v1177 = vadd.f32 0.0, %v1176
        %v1178 = vpop.f32.mrf.mxu0
        %v1179 = vpop.f32.mrf.mxu0
        %v1180 = vpop.f32.mrf.mxu0
        %1181 = vdwg.mxu0
        %v1182 = vsel %vm498, %v1128, 0.0
        %v1183 = vsel %vm498, %v1177, 0.0
        %v1184 = vadd.f32 %v1182, %v1183
        %v1185 = vadd.f32 %v492, %v1184
        %v1186 = vmul.f32 %v1185, %v1185
        %v1187 = vsel %vm498, %v1186, 0.0
        %1188 = vadd.xlane.f32.xlu0 %v1187
        %v1189 = vpop.xlane.xlu0 %1188
        %v1190 = vmul.f32 %v1189, %v502
        %v1191 = vadd.f32 %v1190, 1e-06
        %v1192 = vrsqrt.pop %v1191
        %v1193 = vmul.f32 %v1185, %v1192
        %v1194 = vld [vmem:[%s5] sm:$0x1]
        %v1195 = vunpack.c.l.bf16 %v1194
        %v1196 = vlaneseq
        %v1197 = vshrl.u32 %v1196, 7
        %v1198 = vsub.s32 0, %v1197
        %v1199 = vrot.slane %v1195, %v1198
        %v1200 = vmul.f32 %v1193, %v1199
        %v1201 = vpack.c.bf16 %v1200, %v1200
        %v1202 = vld [vmem:[%s6] sm:$0xf]
        %v1203 = vld [vmem:[%s6 + $0x4] sm:$0xf]
        %v1204 = vld [vmem:[%s6 + $0x8] sm:$0xf]
        %v1205 = vld [vmem:[%s6 + $0xc] sm:$0xf]
        %v1210 = vunpack.c.l.b16 %v1202
        %v1211 = vunpack.c.l.b16 %v1203
        %v1212 = vunpack.c.l.b16 %v1204
        %v1213 = vunpack.c.l.b16 %v1205
        %v1214 = vpack.c.b16 %v1211, %v1210
        %v1215 = vpack.c.b16 %v1213, %v1212
        %v1219 = vsel %vm498, %v1201, 0
        %1221 = vmatprep.subr.bf16.mxu0 0
        %1222 = vmatpush1.bf16.msra.mxu0 0
        %1223 = vmatprep.subr.bf16.mxu0 0
        %1224 = vmatpush1.bf16.msra.mxu0 0
        %1225 = vmatprep.subr.bf16.mxu0 0
        %1226 = vmatpush1.bf16.msra.mxu0 0
        %1227 = vmatprep.subr.bf16.mxu0 0
        %1228 = vmatpush1.bf16.msra.mxu0 0
        %1229 = vmatprep.subr.bf16.mxu0 0
        %1230 = vmatpush1.bf16.msra.mxu0 0
        %1231 = vmatprep.subr.bf16.mxu0 0
        %1232 = vmatpush1.bf16.msra.mxu0 0
        %1233 = vmatprep.subr.bf16.mxu0 0
        %1234 = vmatpush1.bf16.msra.mxu0 %v1215
        %1235 = vmatprep.subr.bf16.mxu0 0
        %1236 = vmatpush1.bf16.msra.mxu0 %v1214
        %1237 = vmatprep.subr.bf16.mxu0 0
        %1238 = vmatpush2.bf16.msra.mxu0 0
        %1239 = vmatprep.subr.bf16.mxu0 0
        %1240 = vmatpush2.bf16.msra.mxu0 0
        %1241 = vmatprep.subr.bf16.mxu0 0
        %1242 = vmatpush2.bf16.msra.mxu0 0
        %1243 = vmatprep.subr.bf16.mxu0 0
        %1244 = vmatpush2.bf16.msra.mxu0 0
        %1245 = vmatprep.subr.bf16.mxu0 0
        %1246 = vmatpush2.bf16.msra.mxu0 0
        %1247 = vmatprep.subr.bf16.mxu0 0
        %1248 = vmatpush2.bf16.msra.mxu0 0
        %1249 = vmatprep.subr.bf16.mxu0 0
        %1250 = vmatpush2.bf16.msra.mxu0 0
        %1251 = vmatprep.subr.bf16.mxu0 0
        %1252 = vmatpush2.bf16.msra.mxu0 0
        %1253 = vmatprep.mubr.bf16.mxu0 0
        %1254 = vmatmul.mubr.bf16.gmra.mxu0 %v1219
        %v1255 = vpop.f32.mrf.mxu0
        %v1256 = vadd.f32 0.0, %v1255
        %v1257 = vpop.f32.mrf.mxu0
        %v1258 = vpop.f32.mrf.mxu0
        %v1259 = vpop.f32.mrf.mxu0
        %1260 = vdwg.mxu0
        %v1261 = vld [vmem:[%s7] sm:$0xf]
        %v1262 = vld [vmem:[%s7 + $0x4] sm:$0xf]
        %v1263 = vld [vmem:[%s7 + $0x8] sm:$0xf]
        %v1264 = vld [vmem:[%s7 + $0xc] sm:$0xf]
        %v1269 = vunpack.c.l.b16 %v1261
        %v1270 = vunpack.c.l.b16 %v1262
        %v1271 = vunpack.c.l.b16 %v1263
        %v1272 = vunpack.c.l.b16 %v1264
        %v1273 = vpack.c.b16 %v1270, %v1269
        %v1274 = vpack.c.b16 %v1272, %v1271
        %1277 = vmatprep.subr.bf16.mxu0 0
        %1278 = vmatpush1.bf16.msra.mxu0 0
        %1279 = vmatprep.subr.bf16.mxu0 0
        %1280 = vmatpush1.bf16.msra.mxu0 0
        %1281 = vmatprep.subr.bf16.mxu0 0
        %1282 = vmatpush1.bf16.msra.mxu0 0
        %1283 = vmatprep.subr.bf16.mxu0 0
        %1284 = vmatpush1.bf16.msra.mxu0 0
        %1285 = vmatprep.subr.bf16.mxu0 0
        %1286 = vmatpush1.bf16.msra.mxu0 0
        %1287 = vmatprep.subr.bf16.mxu0 0
        %1288 = vmatpush1.bf16.msra.mxu0 0
        %1289 = vmatprep.subr.bf16.mxu0 0
        %1290 = vmatpush1.bf16.msra.mxu0 %v1274
        %1291 = vmatprep.subr.bf16.mxu0 0
        %1292 = vmatpush1.bf16.msra.mxu0 %v1273
        %1293 = vmatprep.subr.bf16.mxu0 0
        %1294 = vmatpush2.bf16.msra.mxu0 0
        %1295 = vmatprep.subr.bf16.mxu0 0
        %1296 = vmatpush2.bf16.msra.mxu0 0
        %1297 = vmatprep.subr.bf16.mxu0 0
        %1298 = vmatpush2.bf16.msra.mxu0 0
        %1299 = vmatprep.subr.bf16.mxu0 0
        %1300 = vmatpush2.bf16.msra.mxu0 0
        %1301 = vmatprep.subr.bf16.mxu0 0
        %1302 = vmatpush2.bf16.msra.mxu0 0
        %1303 = vmatprep.subr.bf16.mxu0 0
        %1304 = vmatpush2.bf16.msra.mxu0 0
        %1305 = vmatprep.subr.bf16.mxu0 0
        %1306 = vmatpush2.bf16.msra.mxu0 0
        %1307 = vmatprep.subr.bf16.mxu0 0
        %1308 = vmatpush2.bf16.msra.mxu0 0
        %1309 = vmatprep.mubr.bf16.mxu0 0
        %1310 = vmatmul.mubr.bf16.gmra.mxu0 %v1219
        %v1311 = vpop.f32.mrf.mxu0
        %v1312 = vadd.f32 0.0, %v1311
        %v1313 = vpop.f32.mrf.mxu0
        %v1314 = vpop.f32.mrf.mxu0
        %v1315 = vpop.f32.mrf.mxu0
        %1316 = vdwg.mxu0
        %v1317 = vsub.f32 0.0, %v1256
        %v1318 = vmul.f32 %v1317, 1.442695
        %v1319 = vpow.pop %v1318
        %v1320 = vadd.f32 %v1319, 1.0
        %v1321 = vrcp.pop %v1320
        %v1322 = vmul.f32 1.0, %v1321
        %v1323 = vmul.f32 %v1256, %v1322
        %v1324 = vmul.f32 %v1323, %v1312
        %v1325 = vpack.c.bf16 %v1324, %v1324
        %v1326 = vld [vmem:[%s8] sm:$0xf]
        %v1327 = vld [vmem:[%s8 + $0x4] sm:$0xf]
        %v1328 = vld [vmem:[%s8 + $0x8] sm:$0xf]
        %v1329 = vld [vmem:[%s8 + $0xc] sm:$0xf]
        %v1330 = vld [vmem:[%s8 + $0x10] sm:$0xf]
        %v1331 = vld [vmem:[%s8 + $0x14] sm:$0xf]
        %v1332 = vld [vmem:[%s8 + $0x18] sm:$0xf]
        %v1333 = vld [vmem:[%s8 + $0x1c] sm:$0xf]
        %v1342 = vunpack.c.l.b16 %v1326
        %v1343 = vunpack.c.l.b16 %v1327
        %v1344 = vunpack.c.l.b16 %v1328
        %v1345 = vunpack.c.l.b16 %v1329
        %v1346 = vunpack.c.l.b16 %v1330
        %v1347 = vunpack.c.l.b16 %v1331
        %v1348 = vunpack.c.l.b16 %v1332
        %v1349 = vunpack.c.l.b16 %v1333
        %v1350 = vpack.c.b16 %v1343, %v1342
        %v1351 = vpack.c.b16 %v1345, %v1344
        %v1352 = vpack.c.b16 %v1347, %v1346
        %v1353 = vpack.c.b16 %v1349, %v1348
        %vm1358 = vcmask 523264
        %v1360 = vsel %vm1358, %v1325, 0
        %1362 = vmatprep.subr.bf16.mxu0 0
        %1363 = vmatpush1.bf16.msra.mxu0 0
        %1364 = vmatprep.subr.bf16.mxu0 0
        %1365 = vmatpush1.bf16.msra.mxu0 0
        %1366 = vmatprep.subr.bf16.mxu0 0
        %1367 = vmatpush1.bf16.msra.mxu0 0
        %1368 = vmatprep.subr.bf16.mxu0 0
        %1369 = vmatpush1.bf16.msra.mxu0 0
        %1370 = vmatprep.subr.bf16.mxu0 0
        %1371 = vmatpush1.bf16.msra.mxu0 %v1353
        %1372 = vmatprep.subr.bf16.mxu0 0
        %1373 = vmatpush1.bf16.msra.mxu0 %v1352
        %1374 = vmatprep.subr.bf16.mxu0 0
        %1375 = vmatpush1.bf16.msra.mxu0 %v1351
        %1376 = vmatprep.subr.bf16.mxu0 0
        %1377 = vmatpush1.bf16.msra.mxu0 %v1350
        %1378 = vmatprep.subr.bf16.mxu0 0
        %1379 = vmatpush2.bf16.msra.mxu0 0
        %1380 = vmatprep.subr.bf16.mxu0 0
        %1381 = vmatpush2.bf16.msra.mxu0 0
        %1382 = vmatprep.subr.bf16.mxu0 0
        %1383 = vmatpush2.bf16.msra.mxu0 0
        %1384 = vmatprep.subr.bf16.mxu0 0
        %1385 = vmatpush2.bf16.msra.mxu0 0
        %1386 = vmatprep.subr.bf16.mxu0 0
        %1387 = vmatpush2.bf16.msra.mxu0 0
        %1388 = vmatprep.subr.bf16.mxu0 0
        %1389 = vmatpush2.bf16.msra.mxu0 0
        %1390 = vmatprep.subr.bf16.mxu0 0
        %1391 = vmatpush2.bf16.msra.mxu0 0
        %1392 = vmatprep.subr.bf16.mxu0 0
        %1393 = vmatpush2.bf16.msra.mxu0 0
        %1394 = vmatprep.mubr.bf16.mxu0 0
        %1395 = vmatmul.mubr.bf16.gmra.mxu0 %v1360
        %v1396 = vpop.f32.mrf.mxu0
        %v1397 = vadd.f32 0.0, %v1396
        %v1398 = vpop.f32.mrf.mxu0
        %v1399 = vpop.f32.mrf.mxu0
        %v1400 = vpop.f32.mrf.mxu0
        %1401 = vdwg.mxu0
        %v1402 = vadd.f32 %v1185, %v1397
        %v1403 = vmul.f32 %v1402, %v1402
        %v1404 = vsel %vm498, %v1403, 0.0
        %1405 = vadd.xlane.f32.xlu0 %v1404
        %v1406 = vpop.xlane.xlu0 %1405
        %v1407 = vmul.f32 %v1406, %v502
        %v1408 = vadd.f32 %v1407, 1e-06
        %v1409 = vrsqrt.pop %v1408
        %v1410 = vmul.f32 %v1402, %v1409
        %v1411 = vld [vmem:[%s9] sm:$0x1]
        %v1412 = vunpack.c.l.bf16 %v1411
        %v1413 = vlaneseq
        %v1414 = vshrl.u32 %v1413, 7
        %v1415 = vsub.s32 0, %v1414
        %v1416 = vrot.slane %v1412, %v1415
        %v1417 = vmul.f32 %v1410, %v1416
        %v1418 = vpack.c.bf16 %v1417, %v1417
        %v1419 = vld [vmem:[%s10] sm:$0xf]
        %v1420 = vld [vmem:[%s10 + $0x4] sm:$0xf]
        %v1421 = vld [vmem:[%s10 + $0x8] sm:$0xf]
        %v1422 = vld [vmem:[%s10 + $0xc] sm:$0xf]
        %v1427 = vunpack.c.l.b16 %v1419
        %v1428 = vunpack.c.l.b16 %v1420
        %v1429 = vunpack.c.l.b16 %v1421
        %v1430 = vunpack.c.l.b16 %v1422
        %v1431 = vpack.c.b16 %v1428, %v1427
        %v1432 = vpack.c.b16 %v1430, %v1429
        %v1436 = vsel %vm498, %v1418, 0
        %1438 = vmatprep.subr.bf16.mxu0 0
        %1439 = vmatpush1.bf16.msra.mxu0 0
        %1440 = vmatprep.subr.bf16.mxu0 0
        %1441 = vmatpush1.bf16.msra.mxu0 0
        %1442 = vmatprep.subr.bf16.mxu0 0
        %1443 = vmatpush1.bf16.msra.mxu0 0
        %1444 = vmatprep.subr.bf16.mxu0 0
        %1445 = vmatpush1.bf16.msra.mxu0 0
        %1446 = vmatprep.subr.bf16.mxu0 0
        %1447 = vmatpush1.bf16.msra.mxu0 0
        %1448 = vmatprep.subr.bf16.mxu0 0
        %1449 = vmatpush1.bf16.msra.mxu0 0
        %1450 = vmatprep.subr.bf16.mxu0 0
        %1451 = vmatpush1.bf16.msra.mxu0 %v1432
        %1452 = vmatprep.subr.bf16.mxu0 0
        %1453 = vmatpush1.bf16.msra.mxu0 %v1431
        %1454 = vmatprep.subr.bf16.mxu0 0
        %1455 = vmatpush2.bf16.msra.mxu0 0
        %1456 = vmatprep.subr.bf16.mxu0 0
        %1457 = vmatpush2.bf16.msra.mxu0 0
        %1458 = vmatprep.subr.bf16.mxu0 0
        %1459 = vmatpush2.bf16.msra.mxu0 0
        %1460 = vmatprep.subr.bf16.mxu0 0
        %1461 = vmatpush2.bf16.msra.mxu0 0
        %1462 = vmatprep.subr.bf16.mxu0 0
        %1463 = vmatpush2.bf16.msra.mxu0 0
        %1464 = vmatprep.subr.bf16.mxu0 0
        %1465 = vmatpush2.bf16.msra.mxu0 0
        %1466 = vmatprep.subr.bf16.mxu0 0
        %1467 = vmatpush2.bf16.msra.mxu0 0
        %1468 = vmatprep.subr.bf16.mxu0 0
        %1469 = vmatpush2.bf16.msra.mxu0 0
        %1470 = vmatprep.mubr.bf16.mxu0 0
        %1471 = vmatmul.mubr.bf16.gmra.mxu0 %v1436
        %v1472 = vpop.f32.mrf.mxu0
        %v1473 = vadd.f32 0.0, %v1472
        %v1474 = vpop.f32.mrf.mxu0
        %v1475 = vpop.f32.mrf.mxu0
        %v1476 = vpop.f32.mrf.mxu0
        %1477 = vdwg.mxu0
        %1478 = vst [vmem:[%s377] sm:$0xff] %v1473
        %s1479 = sand.u32 %s269, 1
        %s1480 = scalar_lea.sflag [#allocation3], %s1479
        %s1481 = sand.u32 %s269, 1
        %s1482 = smul.addr %s1481, 8
        %s1483 = scalar_lea.vmem [#allocation2], %s1482
        // Predicated region
        $region65: #{wronai_forward.1} parent=63 // pred_check
          %p1484 = pneg %p279
        $region66: #{wronai_forward.1} parent=63 // pred_check_branch
          %1486 = sbr.rel (%p1484) target = $region68
        $region67: #{wronai_forward.1} parent=63 // pred_region
          %s1488 = ssub.s32 128, 128
          %1489 = vsyncadd %s1480, %s1488
          %s1490 = smul.addr %s25, 128
          %s1491 = scalar_lea.hbm %s11, %s1490
          %s1493 = sshll.u32 %s1483, 4
          %s1494 = int_to_ptr.vmem [resolvable:$true] %s1493
          %1496 = dma.vmem_to_hbm [thread:$0]  %s1494, 128, %s1491, %s1480
        $region68: #{wronai_forward.1} parent=63 // pred_fallthru
          _
      $region64: #{wronai_forward.1} parent=5 // pred_fallthru
        _
      %p1497 = scmp.le.s32.totalorder 2, %s20
      // Predicated region
      $region69: #{wronai_forward.1} parent=5 // pred_check
        %p1498 = pneg %p1497
      $region70: #{wronai_forward.1} parent=5 // pred_check_branch
        %1500 = sbr.rel (%p1498) target = $region72
      $region71: #{wronai_forward.1} parent=5 // pred_region
        %s1501 = ssub.s32 %s20, 2
        // Predicated region
        $region73: #{wronai_forward.1} parent=71 // pred_check
          %p1502 = pneg %p285
        $region74: #{wronai_forward.1} parent=71 // pred_check_branch
          %1504 = sbr.rel (%p1502) target = $region76
        $region75: #{wronai_forward.1} parent=71 // pred_region
          %s1505 = sand.u32 %s270, 1
          %s1506 = scalar_lea.sflag [#allocation3], %s1505
          %s1507 = sand.u32 %s270, 1
          %s1508 = smul.addr %s1507, 8
          %s1509 = scalar_lea.vmem [#allocation2], %s1508
          %1510 = dma.done %s1506, 128
        $region76: #{wronai_forward.1} parent=71 // pred_fallthru
          _
      $region72: #{wronai_forward.1} parent=5 // pred_fallthru
        _
    $region6: #{wronai_forward.1} parent=1 // loop_footer
      %s24 = sadd.s32 1, %s20
    $region7: #{wronai_forward.1} parent=1 // loop_footer_branch
      %19 = sbr.rel target = $region3
    $region8: #{wronai_forward.1} parent=1 // loop_exit
      _
    %1511 = vsyncpa [#allocation3], 1
    %s1512 = scalar_lea.sflag [#allocation3], 1
    %1513 = vsyncpa %s1512, 1

</llo_original>
